<compile_context>
chip_gen: v5e
topology: v5e:2x2
jax: 0.10.0
libtpu: 0.0.40
codegen_flags: <defaults>
</compile_context>

<pallas_src>
import functools
import math

import jax
import jax.numpy as jnp
from jax.experimental import pallas as pl
from jax.experimental.pallas import tpu as pltpu

_LANE = 128                    # lane tile (last dim) for f32
_MIB = 1 << 20
_FUSED_VMEM_GUARD = 48 * _MIB  # above this, whole-net-resident won't fit v7x VMEM


def _round_up(x, m):
    return ((x + m - 1) // m) * m


def _choose_batch_tile(batch):
    """Batch tile in {128, 256}; the batch is zero-padded to a multiple of it.

    128 fills the MXU rows and guarantees grid >= 2 (both v7x TensorCores busy)
    as soon as batch > 128; very large batches use 256 to cut per-step overhead.
    """
    return 128 if batch <= 1024 else 256


# --------------------------------------------------------------------------
# Fused whole-network kernel
# --------------------------------------------------------------------------
def _mlp_kernel(*refs, num_hidden):
    """x -> [Linear + ReLU] * num_hidden -> Linear, all inside one kernel body.

    refs = (x_ref, w0_ref, b0_ref, ..., wL_ref, bL_ref, o_ref)
    Weights are pre-transposed to [in_pad, out_pad]; biases are [1, out_pad] f32.
    Inter-layer activations live entirely in VMEM / vregs (never touch HBM).
    """
    x_ref, o_ref = refs[0], refs[-1]
    wb = refs[1:-1]

    a = x_ref[...]                                  # f32 activations
    for i in range(num_hidden):
        w = wb[2 * i][...]
        b = wb[2 * i + 1][...]
        y = jnp.dot(a.astype(w.dtype), w, preferred_element_type=jnp.float32)
        a = jnp.maximum(y + b, 0.0)                 # bias-add / ReLU in f32
    w = wb[-2][...]
    b = wb[-1][...]
    y = jnp.dot(a.astype(w.dtype), w, preferred_element_type=jnp.float32) + b
    o_ref[...] = y.astype(o_ref.dtype)


def _fused_in_specs(tb, in_dim, weights, biases, single_buffer_params):
    # Weights/biases have a constant index_map -> they stay VMEM-resident; with
    # Buffered(1) they are single-buffered (double-buffering a constant block
    # never hides a DMA, it only doubles VMEM).
    kw = dict(pipeline_mode=pl.Buffered(1)) if single_buffer_params else {}
    specs = [pl.BlockSpec((tb, in_dim), lambda i: (i, 0))]
    for w, b in zip(weights, biases):
        wi, wo = w.shape
        specs.append(pl.BlockSpec((wi, wo), lambda i: (0, 0), **kw))
        specs.append(pl.BlockSpec((1, wo), lambda i: (0, 0), **kw))
    return specs


def fused_mlp_forward(x, weights, biases, *, tb, vmem_bytes, cost):
    """Single pallas_call for the whole MLP.

    x:       [B_pad, in_pad]   (B_pad a multiple of tb, in_pad a multiple of 128)
    weights: list of [in_pad_i, out_pad_i]  (pre-transposed, zero-padded)
    biases:  list of [1, out_pad_i]         (f32, zero-padded)
    returns: [B_pad, out_pad_last]          (caller slices the real rows/cols)
    """
    b_pad, in_dim = x.shape
    out_dim = weights[-1].shape[1]
    grid = (b_pad // tb,)

    args = [x]
    for w, b in zip(weights, biases):
        args += [w, b]
    kernel = functools.partial(_mlp_kernel, num_hidden=len(weights) - 1)

    def build(single_buffer_params):
        return pl.pallas_call(
            kernel,
            out_shape=jax.ShapeDtypeStruct((b_pad, out_dim), x.dtype),
            grid=grid,
            in_specs=_fused_in_specs(tb, in_dim, weights, biases,
                                     single_buffer_params),
            out_specs=pl.BlockSpec((tb, out_dim), lambda i: (i, 0)),
            compiler_params=pltpu.CompilerParams(
                dimension_semantics=("parallel",),   # batch-parallel across TCs
                vmem_limit_bytes=int(vmem_bytes)),
            cost_estimate=cost,
        )

    try:
        return build(True)(*args)
    except Exception:
        # Fallback for environments where pl.Buffered(1) is not supported:
        # identical semantics, just default (double-buffered) parameter specs.
        return build(False)(*args)


# --------------------------------------------------------------------------
# Per-layer fallback (used when the whole net would not fit VMEM-resident)
# --------------------------------------------------------------------------
def _linear_kernel(x_ref, w_ref, b_ref, o_ref, *, relu):
    y = jnp.dot(x_ref[...].astype(w_ref.dtype), w_ref[...],
                preferred_element_type=jnp.float32) + b_ref[...]
    if relu:
        y = jnp.maximum(y, 0.0)
    o_ref[...] = y.astype(o_ref.dtype)


def _pick_lane_tile(n):
    for cand in (512, 256, 128):
        if n % cand == 0:
            return cand
    return n


def linear_forward(x, w, b, *, relu, tb):
    """One lane-dense Linear(+ReLU) pallas_call, tiled over (batch, out-features)."""
    b_pad, k = x.shape
    _, n = w.shape
    tn = _pick_lane_tile(n)
    need = 4 * (2 * tb * k + 2 * k * tn + 2 * tn + 2 * tb * tn)
    vmem_bytes = min(max(32 * _MIB, int(need * 1.2)), 110 * _MIB)
    flops = 2 * b_pad * k * n
    byt = (x.size * x.dtype.itemsize + w.size * w.dtype.itemsize
           + b.size * b.dtype.itemsize + b_pad * n * x.dtype.itemsize)
    return pl.pallas_call(
        functools.partial(_linear_kernel, relu=relu),
        out_shape=jax.ShapeDtypeStruct((b_pad, n), x.dtype),
        grid=(b_pad // tb, n // tn),
        in_specs=[pl.BlockSpec((tb, k), lambda i, j: (i, 0)),
                  pl.BlockSpec((k, tn), lambda i, j: (0, j)),
                  pl.BlockSpec((1, tn), lambda i, j: (0, j))],
        out_specs=pl.BlockSpec((tb, tn), lambda i, j: (i, j)),
        compiler_params=pltpu.CompilerParams(
            dimension_semantics=("parallel", "parallel"),
            vmem_limit_bytes=int(vmem_bytes)),
        cost_estimate=pl.CostEstimate(flops=int(flops), transcendentals=0,
                                      bytes_accessed=int(byt)),
    )(x, w, b)


# --------------------------------------------------------------------------
# Module wrapper (mirrors the PyTorch MLP)
# --------------------------------------------------------------------------
class MLPPallas:
    """Mirror of the PyTorch MLP module; the forward runs as Pallas kernels."""

    def __init__(self, input_size, output_size, num_hidden_layers=2,
                 hidden_size=(500, 500, 100, 10), *, key, dtype=jnp.float32,
                 use_bf16_weights=False):
        self.input_size = tuple(input_size)
        self.num_hidden_layers = num_hidden_layers
        self.hidden_size = (list(hidden_size)
                            if isinstance(hidden_size, (list, tuple))
                            else [int(hidden_size)] * num_hidden_layers)
        self.output_size = output_size

        layers = [self.input_size[0] * self.input_size[1]] + list(self.hidden_size)

        # PyTorch-convention params (W: [out, in], b: [out]) -- kept for the
        # pure-JAX reference check. The kernel consumes the padded copies below.
        self.params = []
        for l1, l2 in zip(layers[:-1], layers[1:]):
            key, kw, kb = jax.random.split(key, 3)
            bound = 1.0 / math.sqrt(l1)   # torch.nn.Linear default init range
            W = jax.random.uniform(kw, (l2, l1), dtype, minval=-bound, maxval=bound)
            b = jax.random.uniform(kb, (l2,), dtype, minval=-bound, maxval=bound)
            self.params.append((W, b))
        key, kw, kb = jax.random.split(key, 3)
        bound = 1.0 / math.sqrt(layers[-1])
        W = jax.random.uniform(kw, (self.output_size, layers[-1]), dtype,
                               minval=-bound, maxval=bound)
        b = jax.random.uniform(kb, (self.output_size,), dtype,
                               minval=-bound, maxval=bound)
        self.last = (W, b)

        # Kernel-ready layout, computed ONCE at init:
        #   every dim padded up to a multiple of 128 (lane-dense activations),
        #   W -> [in_pad, out_pad] (transposed, zero-padded),
        #   b -> [1, out_pad] (zero-padded; padded entries MUST be 0 so ReLU of
        #   padded columns stays exactly 0 and the result matches the reference).
        logical = layers + [self.output_size]
        padded = [_round_up(d, _LANE) for d in logical]
        self._in_dim = logical[0]
        self._in_pad = padded[0]
        self._out_pad = padded[-1]

        w_dtype = jnp.bfloat16 if use_bf16_weights else dtype
        self._k_weights, self._k_biases = [], []
        for li, (W, b) in enumerate(self.params + [self.last]):
            in_l, out_l = logical[li], logical[li + 1]
            in_p, out_p = padded[li], padded[li + 1]
            Wk = jnp.zeros((in_p, out_p), dtype).at[:in_l, :out_l].set(W.T)
            bk = jnp.zeros((1, out_p), dtype).at[:, :out_l].set(b)
            self._k_weights.append(Wk.astype(w_dtype))
            self._k_biases.append(bk)   # biases stay f32 (epilogue in f32)

    def __call__(self, x, *, force_per_layer=False):
        # x: [..., H, W]; flatten like torch reshape(-1, H*W)
        x = x.reshape(-1, self._in_dim).astype(jnp.float32)
        batch = x.shape[0]
        tb = _choose_batch_tile(batch)
        b_pad = _round_up(batch, tb)
        pad_rows = b_pad - batch
        pad_cols = self._in_pad - self._in_dim
        if pad_rows or pad_cols:
            x = jnp.pad(x, ((0, pad_rows), (0, pad_cols)))

        w_bytes = sum(int(w.size) * w.dtype.itemsize for w in self._k_weights)
        b_bytes = sum(int(b.size) * b.dtype.itemsize for b in self._k_biases)
        widest = max(int(w.shape[1]) for w in self._k_weights)
        resident = (w_bytes + b_bytes
                    + 2 * tb * self._in_pad * 4      # double-buffered input tile
                    + 2 * tb * self._out_pad * 4     # double-buffered output tile
                    + 2 * tb * widest * 4)           # live activation slabs

        if force_per_layer or resident > _FUSED_VMEM_GUARD:
            # Whole-net-resident would not fit VMEM (v7x: 64 MiB): run one
            # lane-dense Linear(+ReLU) pallas_call per layer instead.
            a = x
            nl = len(self._k_weights)
            for li, (w, b) in enumerate(zip(self._k_weights, self._k_biases)):
                a = linear_forward(a, w, b, relu=(li < nl - 1), tb=tb)
            y = a
        else:
            vmem_bytes = min(max(32 * _MIB, int(resident * 1.2)), 110 * _MIB)
            flops = 2 * b_pad * sum(int(w.shape[0]) * int(w.shape[1])
                                    for w in self._k_weights)
            byt = w_bytes + b_bytes + int(x.size) * 4 + b_pad * self._out_pad * 4
            cost = pl.CostEstimate(flops=int(flops), transcendentals=0,
                                   bytes_accessed=int(byt))
            y = fused_mlp_forward(x, self._k_weights, self._k_biases,
                                  tb=tb, vmem_bytes=vmem_bytes, cost=cost)
        return y[:batch, :self.output_size]


def _reference_forward(model, x):
    flat = model.input_size[0] * model.input_size[1]
    x = x.reshape(-1, flat).astype(jnp.float32)
    for (W, b) in model.params:
        x = jnp.maximum(x @ W.T + b, 0.0)
    W, b = model.last
    return x @ W.T + b


if __name__ == "__main__":
    key = jax.random.PRNGKey(0)
    k_in, k_model, k_in2 = jax.random.split(key, 3)

    # Small shapes consistent with the module: "images" of 16x16, batch=2,
    # two hidden blocks [128, 64], 10 output classes.
    batch, H, W = 2, 16, 16
    model = MLPPallas(input_size=(H, W), output_size=10,
                      num_hidden_layers=2, hidden_size=[128, 64], key=k_model)

    x = jax.random.normal(k_in, (batch, H, W), jnp.float32)
    out = jax.block_until_ready(model(x))
    ref = _reference_forward(model, x)
    assert out.shape == (batch, 10), out.shape
    assert jnp.allclose(out, ref, atol=1e-4, rtol=1e-4), "fused f32 mismatch"

    # Larger batch -> multi-step batch-parallel grid (both v7x TCs busy).
    x_big = jax.random.normal(k_in2, (300, H, W), jnp.float32)
    out_big = jax.block_until_ready(model(x_big))
    ref_big = _reference_forward(model, x_big)
    assert out_big.shape == (300, 10)
    assert jnp.allclose(out_big, ref_big, atol=1e-4, rtol=1e-4), "big-batch mismatch"

    # Forced per-layer fallback path (what the >48 MiB VMEM guard would select).
    out_pl = jax.block_until_ready(model(x, force_per_layer=True))
    assert jnp.allclose(out_pl, ref, atol=1e-4, rtol=1e-4), "per-layer mismatch"

    # Opt-in bf16 weight path (halved weight traffic/VMEM; relaxed tolerance).
    model_bf16 = MLPPallas(input_size=(H, W), output_size=10,
                           num_hidden_layers=2, hidden_size=[128, 64],
                           key=k_model, use_bf16_weights=True)
    out_bf = jax.block_until_ready(model_bf16(x))
    ref_bf = _reference_forward(model_bf16, x)
    assert jnp.allclose(out_bf, ref_bf, atol=0.25, rtol=0.25), "bf16 mismatch"

    print("KERNEL_OK")
</pallas_src>

<mosaic_0001>
module attributes {stable_mosaic.version = 11 : i64} {
  func.func @_mlp_kernel(%arg0: i32, %arg1: memref<128x256xf32, #tpu.memory_space<vmem>>, %arg2: memref<256x128xf32, #tpu.memory_space<vmem>>, %arg3: memref<1x128xf32, #tpu.memory_space<vmem>>, %arg4: memref<128x128xf32, #tpu.memory_space<vmem>>, %arg5: memref<1x128xf32, #tpu.memory_space<vmem>>, %arg6: memref<128x128xf32, #tpu.memory_space<vmem>>, %arg7: memref<1x128xf32, #tpu.memory_space<vmem>>, %arg8: memref<128x128xf32, #tpu.memory_space<vmem>>) attributes {dimension_semantics = [#tpu.dimension_semantics<parallel>], iteration_bounds = array<i64: 1>, scalar_prefetch = 0 : i64, scratch_operands = 0 : i64, tpu.core_type = #tpu.core_type<tc>, window_params = [{transform_indices = @transform_0, window_bounds = array<i64: 128, 256>}, {pipeline_mode = #tpu.pipeline_mode<synchronous>, transform_indices = @transform_1, window_bounds = array<i64: 256, 128>}, {pipeline_mode = #tpu.pipeline_mode<synchronous>, transform_indices = @transform_2, window_bounds = array<i64: 1, 128>}, {pipeline_mode = #tpu.pipeline_mode<synchronous>, transform_indices = @transform_3, window_bounds = array<i64: 128, 128>}, {pipeline_mode = #tpu.pipeline_mode<synchronous>, transform_indices = @transform_4, window_bounds = array<i64: 1, 128>}, {pipeline_mode = #tpu.pipeline_mode<synchronous>, transform_indices = @transform_5, window_bounds = array<i64: 128, 128>}, {pipeline_mode = #tpu.pipeline_mode<synchronous>, transform_indices = @transform_6, window_bounds = array<i64: 1, 128>}, {transform_indices = @transform_7, window_bounds = array<i64: 128, 128>}]} {
    %c0 = arith.constant 0 : index
    %c0_0 = arith.constant 0 : index
    %0 = vector.load %arg1[%c0, %c0_0] : memref<128x256xf32, #tpu.memory_space<vmem>>, vector<128x256xf32>
    %c0_1 = arith.constant 0 : index
    %c0_2 = arith.constant 0 : index
    %1 = vector.load %arg2[%c0_1, %c0_2] : memref<256x128xf32, #tpu.memory_space<vmem>>, vector<256x128xf32>
    %c0_3 = arith.constant 0 : index
    %c0_4 = arith.constant 0 : index
    %2 = vector.load %arg3[%c0_3, %c0_4] : memref<1x128xf32, #tpu.memory_space<vmem>>, vector<1x128xf32>
    %cst = arith.constant dense<0.000000e+00> : vector<128x128xf32>
    %3 = tpu.matmul %0, %1, %cst {dimension_numbers = #tpu.dot_dimension_numbers<[1], [0], [0], [1], [0, 0, 1, 1], [], []>} : vector<128x256xf32>, vector<256x128xf32>, vector<128x128xf32> -> vector<128x128xf32>
    %4 = vector.broadcast %2 : vector<1x128xf32> to vector<128x128xf32>
    %5 = arith.addf %3, %4 : vector<128x128xf32>
    %cst_5 = arith.constant 0.000000e+00 : f32
    %6 = vector.broadcast %cst_5 : f32 to vector<128x128xf32>
    %7 = arith.maximumf %5, %6 : vector<128x128xf32>
    %c0_6 = arith.constant 0 : index
    %c0_7 = arith.constant 0 : index
    %8 = vector.load %arg4[%c0_6, %c0_7] : memref<128x128xf32, #tpu.memory_space<vmem>>, vector<128x128xf32>
    %c0_8 = arith.constant 0 : index
    %c0_9 = arith.constant 0 : index
    %9 = vector.load %arg5[%c0_8, %c0_9] : memref<1x128xf32, #tpu.memory_space<vmem>>, vector<1x128xf32>
    %cst_10 = arith.constant dense<0.000000e+00> : vector<128x128xf32>
    %10 = tpu.matmul %7, %8, %cst_10 {dimension_numbers = #tpu.dot_dimension_numbers<[1], [0], [0], [1], [0, 0, 1, 1], [], []>} : vector<128x128xf32>, vector<128x128xf32>, vector<128x128xf32> -> vector<128x128xf32>
    %11 = vector.broadcast %9 : vector<1x128xf32> to vector<128x128xf32>
    %12 = arith.addf %10, %11 : vector<128x128xf32>
    %cst_11 = arith.constant 0.000000e+00 : f32
    %13 = vector.broadcast %cst_11 : f32 to vector<128x128xf32>
    %14 = arith.maximumf %12, %13 : vector<128x128xf32>
    %c0_12 = arith.constant 0 : index
    %c0_13 = arith.constant 0 : index
    %15 = vector.load %arg6[%c0_12, %c0_13] : memref<128x128xf32, #tpu.memory_space<vmem>>, vector<128x128xf32>
    %c0_14 = arith.constant 0 : index
    %c0_15 = arith.constant 0 : index
    %16 = vector.load %arg7[%c0_14, %c0_15] : memref<1x128xf32, #tpu.memory_space<vmem>>, vector<1x128xf32>
    %cst_16 = arith.constant dense<0.000000e+00> : vector<128x128xf32>
    %17 = tpu.matmul %14, %15, %cst_16 {dimension_numbers = #tpu.dot_dimension_numbers<[1], [0], [0], [1], [0, 0, 1, 1], [], []>} : vector<128x128xf32>, vector<128x128xf32>, vector<128x128xf32> -> vector<128x128xf32>
    %18 = vector.broadcast %16 : vector<1x128xf32> to vector<128x128xf32>
    %19 = arith.addf %17, %18 : vector<128x128xf32>
    %c0_17 = arith.constant 0 : index
    %c0_18 = arith.constant 0 : index
    %20 = vector.load %arg8[%c0_17, %c0_18] : memref<128x128xf32, #tpu.memory_space<vmem>>, vector<128x128xf32>
    tpu.vector_store %arg8[%c0_17, %c0_18], %19 {strides = array<i32>} : memref<128x128xf32, #tpu.memory_space<vmem>>, vector<128x128xf32>,
    return
  }
  func.func @transform_0(%arg0: i32) -> (i32, i32) {
    %c0_i32 = arith.constant 0 : i32
    %c0_i32_0 = arith.constant 0 : i32
    return %arg0, %c0_i32 : i32, i32
  }
  func.func @transform_1(%arg0: i32) -> (i32, i32) {
    %c0_i32 = arith.constant 0 : i32
    %c0_i32_0 = arith.constant 0 : i32
    %c0_i32_1 = arith.constant 0 : i32
    return %c0_i32, %c0_i32_0 : i32, i32
  }
  func.func @transform_2(%arg0: i32) -> (i32, i32) {
    %c0_i32 = arith.constant 0 : i32
    %c0_i32_0 = arith.constant 0 : i32
    %c0_i32_1 = arith.constant 0 : i32
    return %c0_i32, %c0_i32_0 : i32, i32
  }
  func.func @transform_3(%arg0: i32) -> (i32, i32) {
    %c0_i32 = arith.constant 0 : i32
    %c0_i32_0 = arith.constant 0 : i32
    %c0_i32_1 = arith.constant 0 : i32
    return %c0_i32, %c0_i32_0 : i32, i32
  }
  func.func @transform_4(%arg0: i32) -> (i32, i32) {
    %c0_i32 = arith.constant 0 : i32
    %c0_i32_0 = arith.constant 0 : i32
    %c0_i32_1 = arith.constant 0 : i32
    return %c0_i32, %c0_i32_0 : i32, i32
  }
  func.func @transform_5(%arg0: i32) -> (i32, i32) {
    %c0_i32 = arith.constant 0 : i32
    %c0_i32_0 = arith.constant 0 : i32
    %c0_i32_1 = arith.constant 0 : i32
    return %c0_i32, %c0_i32_0 : i32, i32
  }
  func.func @transform_6(%arg0: i32) -> (i32, i32) {
    %c0_i32 = arith.constant 0 : i32
    %c0_i32_0 = arith.constant 0 : i32
    %c0_i32_1 = arith.constant 0 : i32
    return %c0_i32, %c0_i32_0 : i32, i32
  }
  func.func @transform_7(%arg0: i32) -> (i32, i32) {
    %c0_i32 = arith.constant 0 : i32
    %c0_i32_0 = arith.constant 0 : i32
    return %arg0, %c0_i32 : i32, i32
  }
}

module attributes {stable_mosaic.version = 11 : i64} {
  func.func @_mlp_kernel(%arg0: i32, %arg1: memref<128x256xf32, #tpu.memory_space<vmem>>, %arg2: memref<256x128xf32, #tpu.memory_space<vmem>>, %arg3: memref<1x128xf32, #tpu.memory_space<vmem>>, %arg4: memref<128x128xf32, #tpu.memory_space<vmem>>, %arg5: memref<1x128xf32, #tpu.memory_space<vmem>>, %arg6: memref<128x128xf32, #tpu.memory_space<vmem>>, %arg7: memref<1x128xf32, #tpu.memory_space<vmem>>, %arg8: memref<128x128xf32, #tpu.memory_space<vmem>>) attributes {dimension_semantics = [#tpu.dimension_semantics<parallel>], iteration_bounds = array<i64: 1>, scalar_prefetch = 0 : i64, scratch_operands = 0 : i64, tpu.core_type = #tpu.core_type<tc>, window_params = [{transform_indices = @transform_0, window_bounds = array<i64: 128, 256>}, {pipeline_mode = #tpu.pipeline_mode<synchronous>, transform_indices = @transform_1, window_bounds = array<i64: 256, 128>}, {pipeline_mode = #tpu.pipeline_mode<synchronous>, transform_indices = @transform_2, window_bounds = array<i64: 1, 128>}, {pipeline_mode = #tpu.pipeline_mode<synchronous>, transform_indices = @transform_3, window_bounds = array<i64: 128, 128>}, {pipeline_mode = #tpu.pipeline_mode<synchronous>, transform_indices = @transform_4, window_bounds = array<i64: 1, 128>}, {pipeline_mode = #tpu.pipeline_mode<synchronous>, transform_indices = @transform_5, window_bounds = array<i64: 128, 128>}, {pipeline_mode = #tpu.pipeline_mode<synchronous>, transform_indices = @transform_6, window_bounds = array<i64: 1, 128>}, {transform_indices = @transform_7, window_bounds = array<i64: 128, 128>}]} {
    %c0 = arith.constant 0 : index
    %c0_0 = arith.constant 0 : index
    %0 = vector.load %arg1[%c0, %c0_0] : memref<128x256xf32, #tpu.memory_space<vmem>>, vector<128x256xf32>
    %c0_1 = arith.constant 0 : index
    %c0_2 = arith.constant 0 : index
    %1 = vector.load %arg2[%c0_1, %c0_2] : memref<256x128xf32, #tpu.memory_space<vmem>>, vector<256x128xf32>
    %c0_3 = arith.constant 0 : index
    %c0_4 = arith.constant 0 : index
    %2 = vector.load %arg3[%c0_3, %c0_4] : memref<1x128xf32, #tpu.memory_space<vmem>>, vector<1x128xf32>
    %cst = arith.constant dense<0.000000e+00> : vector<128x128xf32>
    %3 = tpu.matmul %0, %1, %cst {dimension_numbers = #tpu.dot_dimension_numbers<[1], [0], [0], [1], [0, 0, 1, 1], [], []>} : vector<128x256xf32>, vector<256x128xf32>, vector<128x128xf32> -> vector<128x128xf32>
    %4 = vector.broadcast %2 : vector<1x128xf32> to vector<128x128xf32>
    %5 = arith.addf %3, %4 : vector<128x128xf32>
    %cst_5 = arith.constant 0.000000e+00 : f32
    %6 = vector.broadcast %cst_5 : f32 to vector<128x128xf32>
    %7 = arith.maximumf %5, %6 : vector<128x128xf32>
    %c0_6 = arith.constant 0 : index
    %c0_7 = arith.constant 0 : index
    %8 = vector.load %arg4[%c0_6, %c0_7] : memref<128x128xf32, #tpu.memory_space<vmem>>, vector<128x128xf32>
    %c0_8 = arith.constant 0 : index
    %c0_9 = arith.constant 0 : index
    %9 = vector.load %arg5[%c0_8, %c0_9] : memref<1x128xf32, #tpu.memory_space<vmem>>, vector<1x128xf32>
    %cst_10 = arith.constant dense<0.000000e+00> : vector<128x128xf32>
    %10 = tpu.matmul %7, %8, %cst_10 {dimension_numbers = #tpu.dot_dimension_numbers<[1], [0], [0], [1], [0, 0, 1, 1], [], []>} : vector<128x128xf32>, vector<128x128xf32>, vector<128x128xf32> -> vector<128x128xf32>
    %11 = vector.broadcast %9 : vector<1x128xf32> to vector<128x128xf32>
    %12 = arith.addf %10, %11 : vector<128x128xf32>
    %cst_11 = arith.constant 0.000000e+00 : f32
    %13 = vector.broadcast %cst_11 : f32 to vector<128x128xf32>
    %14 = arith.maximumf %12, %13 : vector<128x128xf32>
    %c0_12 = arith.constant 0 : index
    %c0_13 = arith.constant 0 : index
    %15 = vector.load %arg6[%c0_12, %c0_13] : memref<128x128xf32, #tpu.memory_space<vmem>>, vector<128x128xf32>
    %c0_14 = arith.constant 0 : index
    %c0_15 = arith.constant 0 : index
    %16 = vector.load %arg7[%c0_14, %c0_15] : memref<1x128xf32, #tpu.memory_space<vmem>>, vector<1x128xf32>
    %cst_16 = arith.constant dense<0.000000e+00> : vector<128x128xf32>
    %17 = tpu.matmul %14, %15, %cst_16 {dimension_numbers = #tpu.dot_dimension_numbers<[1], [0], [0], [1], [0, 0, 1, 1], [], []>} : vector<128x128xf32>, vector<128x128xf32>, vector<128x128xf32> -> vector<128x128xf32>
    %18 = vector.broadcast %16 : vector<1x128xf32> to vector<128x128xf32>
    %19 = arith.addf %17, %18 : vector<128x128xf32>
    %c0_17 = arith.constant 0 : index
    %c0_18 = arith.constant 0 : index
    %20 = vector.load %arg8[%c0_17, %c0_18] : memref<128x128xf32, #tpu.memory_space<vmem>>, vector<128x128xf32>
    tpu.vector_store %arg8[%c0_17, %c0_18], %19 {strides = array<i32>} : memref<128x128xf32, #tpu.memory_space<vmem>>, vector<128x128xf32>,
    return
  }
  func.func @transform_0(%arg0: i32) -> (i32, i32) {
    %c0_i32 = arith.constant 0 : i32
    %c0_i32_0 = arith.constant 0 : i32
    return %arg0, %c0_i32 : i32, i32
  }
  func.func @transform_1(%arg0: i32) -> (i32, i32) {
    %c0_i32 = arith.constant 0 : i32
    %c0_i32_0 = arith.constant 0 : i32
    %c0_i32_1 = arith.constant 0 : i32
    return %c0_i32, %c0_i32_0 : i32, i32
  }
  func.func @transform_2(%arg0: i32) -> (i32, i32) {
    %c0_i32 = arith.constant 0 : i32
    %c0_i32_0 = arith.constant 0 : i32
    %c0_i32_1 = arith.constant 0 : i32
    return %c0_i32, %c0_i32_0 : i32, i32
  }
  func.func @transform_3(%arg0: i32) -> (i32, i32) {
    %c0_i32 = arith.constant 0 : i32
    %c0_i32_0 = arith.constant 0 : i32
    %c0_i32_1 = arith.constant 0 : i32
    return %c0_i32, %c0_i32_0 : i32, i32
  }
  func.func @transform_4(%arg0: i32) -> (i32, i32) {
    %c0_i32 = arith.constant 0 : i32
    %c0_i32_0 = arith.constant 0 : i32
    %c0_i32_1 = arith.constant 0 : i32
    return %c0_i32, %c0_i32_0 : i32, i32
  }
  func.func @transform_5(%arg0: i32) -> (i32, i32) {
    %c0_i32 = arith.constant 0 : i32
    %c0_i32_0 = arith.constant 0 : i32
    %c0_i32_1 = arith.constant 0 : i32
    return %c0_i32, %c0_i32_0 : i32, i32
  }
  func.func @transform_6(%arg0: i32) -> (i32, i32) {
    %c0_i32 = arith.constant 0 : i32
    %c0_i32_0 = arith.constant 0 : i32
    %c0_i32_1 = arith.constant 0 : i32
    return %c0_i32, %c0_i32_0 : i32, i32
  }
  func.func @transform_7(%arg0: i32) -> (i32, i32) {
    %c0_i32 = arith.constant 0 : i32
    %c0_i32_0 = arith.constant 0 : i32
    return %arg0, %c0_i32 : i32, i32
  }
}

</mosaic_0001>

<llo_original>
// kernel: tpu_custom_call.1
$region0: #{tpu_custom_call.1}
  #allocation0 [shape = 'u32[]', space=smem, size = 0x4, offset = 0x4, fixed_abs, tag = 'smem constant byte address 0x4 - core index']
  #allocation1 [shape = 'u32[72,128]{1,0:T(1,128)}', space=vmem, size = 0x9000, scoped, tag = 'internal scratch']
  %s0 = inlined_call_operand.hbm [shape: f32[128,256], index: 0, kind: input, shape index: {}]
  %s1 = inlined_call_operand.hbm [shape: f32[256,128], index: 1, kind: input, shape index: {}]
  %s2 = inlined_call_operand.vmem [shape: f32[1,128], index: 2, kind: input, shape index: {}]
  %s3 = inlined_call_operand.hbm [shape: f32[128,128], index: 3, kind: input, shape index: {}]
  %s4 = inlined_call_operand.vmem [shape: f32[1,128], index: 4, kind: input, shape index: {}]
  %s5 = inlined_call_operand.hbm [shape: f32[128,128], index: 5, kind: input, shape index: {}]
  %s6 = inlined_call_operand.vmem [shape: f32[1,128], index: 6, kind: input, shape index: {}]
  %s7 = inlined_call_operand.hbm [shape: f32[128,128], index: 7, kind: output, shape index: {}]
  %s8 = sld [smem:[#allocation0]]
  $region54: #{tpu_custom_call.1} parent=0
    _
  %s10 = ssub.s32 1, %s8
  %s11 = scalar_select 0, %s10, %s8
  $region1: #{tpu_custom_call.1} parent=0
    #allocation2 [shape = 'u8[131072]{0}', space=vmem, size = 0x20000, scoped, tag = 'input window, operand 0, single buffered']
    #allocation3 [shape = 's32[1]{0}', space=sflag, size = 0x4, scoped, tag = 'scoped memory for tpu_custom_call.1']
    #allocation4 [shape = 's32[1]{0}', space=sflag, size = 0x4, scoped, tag = 'scoped memory for tpu_custom_call.1']
    #allocation5 [shape = 'u8[131072]{0}', space=vmem, size = 0x20000, scoped, tag = 'input window, operand 1, single buffered']
    #allocation6 [shape = 's32[1]{0}', space=sflag, size = 0x4, scoped, tag = 'scoped memory for tpu_custom_call.1']
    #allocation7 [shape = 'u8[65536]{0}', space=vmem, size = 0x10000, scoped, tag = 'input window, operand 3, single buffered']
    #allocation8 [shape = 'u8[65536]{0}', space=vmem, size = 0x10000, scoped, tag = 'input window, operand 5, single buffered']
    #allocation9 [shape = 's32[1]{0}', space=sflag, size = 0x4, scoped, tag = 'scoped memory for tpu_custom_call.1']
    #allocation10 [shape = 'u8[65536]{0}', space=vmem, size = 0x10000, scoped, tag = 'output window, operand 0, single buffered']
    %12 = vsyncpa [#allocation3], 0
    %13 = vsyncpa [#allocation6], 0
    %14 = vsyncpa [#allocation9], 0
    %15 = vsyncpa [#allocation4], 0
    // Predicated region
    $region2: #{tpu_custom_call.1} parent=1 // pred_check
      _
    $region3: #{tpu_custom_call.1} parent=1 // pred_check_branch
      %17 = sbr.rel (0) target = $region5
    $region4: #{tpu_custom_call.1} parent=1 // pred_region
      %19 = vsyncadd [#allocation3], 0
      %s20 = sshll.u32 %s0, 4
      %s21 = int_to_ptr.hbm [resolvable:$true] %s20
      %s22 = sshll.u32 [#allocation2], 4
      %s23 = int_to_ptr.vmem [resolvable:$true] %s22
      %28 = dma.hbm_to_vmem [thread:$0]  %s21, 4096, %s23, [#allocation3], 256, 256, 16
    $region5: #{tpu_custom_call.1} parent=1 // pred_fallthru
      _
    // Predicated region
    $region6: #{tpu_custom_call.1} parent=1 // pred_check
      _
    $region7: #{tpu_custom_call.1} parent=1 // pred_check_branch
      %30 = sbr.rel (0) target = $region9
    $region8: #{tpu_custom_call.1} parent=1 // pred_region
      %32 = vsyncadd [#allocation6], 0
      %s33 = sshll.u32 %s1, 4
      %s34 = int_to_ptr.hbm [resolvable:$true] %s33
      %s35 = sshll.u32 [#allocation5], 4
      %s36 = int_to_ptr.vmem [resolvable:$true] %s35
      %41 = dma.hbm_to_vmem [thread:$0]  %s34, 4096, %s36, [#allocation6], 128, 128, 8
    $region9: #{tpu_custom_call.1} parent=1 // pred_fallthru
      _
    // Predicated region
    $region10: #{tpu_custom_call.1} parent=1 // pred_check
      _
    $region11: #{tpu_custom_call.1} parent=1 // pred_check_branch
      %43 = sbr.rel (0) target = $region13
    $region12: #{tpu_custom_call.1} parent=1 // pred_region
      _
    $region13: #{tpu_custom_call.1} parent=1 // pred_fallthru
      _
    // Predicated region
    $region14: #{tpu_custom_call.1} parent=1 // pred_check
      _
    $region15: #{tpu_custom_call.1} parent=1 // pred_check_branch
      %45 = sbr.rel (0) target = $region17
    $region16: #{tpu_custom_call.1} parent=1 // pred_region
      %47 = vsyncadd [#allocation6], 0
      %s48 = sshll.u32 %s3, 4
      %s49 = int_to_ptr.hbm [resolvable:$true] %s48
      %s50 = sshll.u32 [#allocation7], 4
      %s51 = int_to_ptr.vmem [resolvable:$true] %s50
      %56 = dma.hbm_to_vmem [thread:$0]  %s49, 2048, %s51, [#allocation6], 128, 128, 8
    $region17: #{tpu_custom_call.1} parent=1 // pred_fallthru
      _
    // Predicated region
    $region18: #{tpu_custom_call.1} parent=1 // pred_check
      _
    $region19: #{tpu_custom_call.1} parent=1 // pred_check_branch
      %58 = sbr.rel (0) target = $region21
    $region20: #{tpu_custom_call.1} parent=1 // pred_region
      _
    $region21: #{tpu_custom_call.1} parent=1 // pred_fallthru
      _
    // Predicated region
    $region22: #{tpu_custom_call.1} parent=1 // pred_check
      _
    $region23: #{tpu_custom_call.1} parent=1 // pred_check_branch
      %60 = sbr.rel (0) target = $region25
    $region24: #{tpu_custom_call.1} parent=1 // pred_region
      %62 = vsyncadd [#allocation9], 0
      %s63 = sshll.u32 %s5, 4
      %s64 = int_to_ptr.hbm [resolvable:$true] %s63
      %s65 = sshll.u32 [#allocation8], 4
      %s66 = int_to_ptr.vmem [resolvable:$true] %s65
      %71 = dma.hbm_to_vmem [thread:$0]  %s64, 2048, %s66, [#allocation9], 128, 128, 8
    $region25: #{tpu_custom_call.1} parent=1 // pred_fallthru
      _
    // Predicated region
    $region26: #{tpu_custom_call.1} parent=1 // pred_check
      _
    $region27: #{tpu_custom_call.1} parent=1 // pred_check_branch
      %73 = sbr.rel (0) target = $region29
    $region28: #{tpu_custom_call.1} parent=1 // pred_region
      _
    $region29: #{tpu_custom_call.1} parent=1 // pred_fallthru
      _
    // Predicated region
    $region30: #{tpu_custom_call.1} parent=1 // pred_check
      _
    $region31: #{tpu_custom_call.1} parent=1 // pred_check_branch
      %75 = sbr.rel (0) target = $region33
    $region32: #{tpu_custom_call.1} parent=1 // pred_region
      %77 = dma.done [#allocation3], 4096
    $region33: #{tpu_custom_call.1} parent=1 // pred_fallthru
      _
    // Predicated region
    $region34: #{tpu_custom_call.1} parent=1 // pred_check
      _
    $region35: #{tpu_custom_call.1} parent=1 // pred_check_branch
      %79 = sbr.rel (0) target = $region37
    $region36: #{tpu_custom_call.1} parent=1 // pred_region
      %81 = dma.done [#allocation6], 4096
    $region37: #{tpu_custom_call.1} parent=1 // pred_fallthru
      _
    // Predicated region
    $region38: #{tpu_custom_call.1} parent=1 // pred_check
      _
    $region39: #{tpu_custom_call.1} parent=1 // pred_check_branch
      %83 = sbr.rel (0) target = $region41
    $region40: #{tpu_custom_call.1} parent=1 // pred_region
      %85 = dma.done [#allocation6], 2048
    $region41: #{tpu_custom_call.1} parent=1 // pred_fallthru
      _
    // Predicated region
    $region42: #{tpu_custom_call.1} parent=1 // pred_check
      _
    $region43: #{tpu_custom_call.1} parent=1 // pred_check_branch
      %87 = sbr.rel (0) target = $region45
    $region44: #{tpu_custom_call.1} parent=1 // pred_region
      %89 = dma.done [#allocation9], 2048
    $region45: #{tpu_custom_call.1} parent=1 // pred_fallthru
      _
    %v90 = vld [vmem:[#allocation2] sm:$0xff]
    %v91 = vld [vmem:[#allocation2 + $0x8] sm:$0xff]
    %v92 = vld [vmem:[#allocation2 + $0x10] sm:$0xff]
    %v93 = vld [vmem:[#allocation2 + $0x18] sm:$0xff]
    %v94 = vld [vmem:[#allocation2 + $0x20] sm:$0xff]
    %v95 = vld [vmem:[#allocation2 + $0x28] sm:$0xff]
    %v96 = vld [vmem:[#allocation2 + $0x30] sm:$0xff]
    %v97 = vld [vmem:[#allocation2 + $0x38] sm:$0xff]
    %v98 = vld [vmem:[#allocation2 + $0x40] sm:$0xff]
    %v99 = vld [vmem:[#allocation2 + $0x48] sm:$0xff]
    %v100 = vld [vmem:[#allocation2 + $0x50] sm:$0xff]
    %v101 = vld [vmem:[#allocation2 + $0x58] sm:$0xff]
    %v102 = vld [vmem:[#allocation2 + $0x60] sm:$0xff]
    %v103 = vld [vmem:[#allocation2 + $0x68] sm:$0xff]
    %v104 = vld [vmem:[#allocation2 + $0x70] sm:$0xff]
    %v105 = vld [vmem:[#allocation2 + $0x78] sm:$0xff]
    %v106 = vld [vmem:[#allocation2 + $0x80] sm:$0xff]
    %v107 = vld [vmem:[#allocation2 + $0x88] sm:$0xff]
    %v108 = vld [vmem:[#allocation2 + $0x90] sm:$0xff]
    %v109 = vld [vmem:[#allocation2 + $0x98] sm:$0xff]
    %v110 = vld [vmem:[#allocation2 + $0xa0] sm:$0xff]
    %v111 = vld [vmem:[#allocation2 + $0xa8] sm:$0xff]
    %v112 = vld [vmem:[#allocation2 + $0xb0] sm:$0xff]
    %v113 = vld [vmem:[#allocation2 + $0xb8] sm:$0xff]
    %v114 = vld [vmem:[#allocation2 + $0xc0] sm:$0xff]
    %v115 = vld [vmem:[#allocation2 + $0xc8] sm:$0xff]
    %v116 = vld [vmem:[#allocation2 + $0xd0] sm:$0xff]
    %v117 = vld [vmem:[#allocation2 + $0xd8] sm:$0xff]
    %v118 = vld [vmem:[#allocation2 + $0xe0] sm:$0xff]
    %v119 = vld [vmem:[#allocation2 + $0xe8] sm:$0xff]
    %v120 = vld [vmem:[#allocation2 + $0xf0] sm:$0xff]
    %v121 = vld [vmem:[#allocation2 + $0xf8] sm:$0xff]
    %v122 = vld [vmem:[#allocation5] sm:$0xff]
    %v123 = vld [vmem:[#allocation5 + $0x8] sm:$0xff]
    %v124 = vld [vmem:[#allocation5 + $0x10] sm:$0xff]
    %v125 = vld [vmem:[#allocation5 + $0x18] sm:$0xff]
    %v126 = vld [vmem:[#allocation5 + $0x20] sm:$0xff]
    %v127 = vld [vmem:[#allocation5 + $0x28] sm:$0xff]
    %v128 = vld [vmem:[#allocation5 + $0x30] sm:$0xff]
    %v129 = vld [vmem:[#allocation5 + $0x38] sm:$0xff]
    %v130 = vld [vmem:[#allocation5 + $0x40] sm:$0xff]
    %v131 = vld [vmem:[#allocation5 + $0x48] sm:$0xff]
    %v132 = vld [vmem:[#allocation5 + $0x50] sm:$0xff]
    %v133 = vld [vmem:[#allocation5 + $0x58] sm:$0xff]
    %v134 = vld [vmem:[#allocation5 + $0x60] sm:$0xff]
    %v135 = vld [vmem:[#allocation5 + $0x68] sm:$0xff]
    %v136 = vld [vmem:[#allocation5 + $0x70] sm:$0xff]
    %v137 = vld [vmem:[#allocation5 + $0x78] sm:$0xff]
    %v138 = vld [vmem:[#allocation5 + $0x80] sm:$0xff]
    %v139 = vld [vmem:[#allocation5 + $0x88] sm:$0xff]
    %v140 = vld [vmem:[#allocation5 + $0x90] sm:$0xff]
    %v141 = vld [vmem:[#allocation5 + $0x98] sm:$0xff]
    %v142 = vld [vmem:[#allocation5 + $0xa0] sm:$0xff]
    %v143 = vld [vmem:[#allocation5 + $0xa8] sm:$0xff]
    %v144 = vld [vmem:[#allocation5 + $0xb0] sm:$0xff]
    %v145 = vld [vmem:[#allocation5 + $0xb8] sm:$0xff]
    %v146 = vld [vmem:[#allocation5 + $0xc0] sm:$0xff]
    %v147 = vld [vmem:[#allocation5 + $0xc8] sm:$0xff]
    %v148 = vld [vmem:[#allocation5 + $0xd0] sm:$0xff]
    %v149 = vld [vmem:[#allocation5 + $0xd8] sm:$0xff]
    %v150 = vld [vmem:[#allocation5 + $0xe0] sm:$0xff]
    %v151 = vld [vmem:[#allocation5 + $0xe8] sm:$0xff]
    %v152 = vld [vmem:[#allocation5 + $0xf0] sm:$0xff]
    %v153 = vld [vmem:[#allocation5 + $0xf8] sm:$0xff]
    %v154 = vld [vmem:[%s2] sm:$0x1]
    %v156 = vperm.slane %v154, 0
    %158 = vmatpush.msra.mxu0 %v137
    %159 = vmatpush.msra.mxu0 %v136
    %160 = vmatpush.msra.mxu0 %v135
    %161 = vmatpush.msra.mxu0 %v134
    %162 = vmatpush.msra.mxu0 %v133
    %163 = vmatpush.msra.mxu0 %v132
    %164 = vmatpush.msra.mxu0 %v131
    %165 = vmatpush.msra.mxu0 %v130
    %166 = vmatpush.msra.mxu0 %v129
    %167 = vmatpush.msra.mxu0 %v128
    %168 = vmatpush.msra.mxu0 %v127
    %169 = vmatpush.msra.mxu0 %v126
    %170 = vmatpush.msra.mxu0 %v125
    %171 = vmatpush.msra.mxu0 %v124
    %172 = vmatpush.msra.mxu0 %v123
    %173 = vmatpush.msra.mxu0 %v122
    %174 = vmatmul.f32.gmra.mxu0 %v90
    %v175 = vpop.f32.mrf.mxu0
    %v176 = vadd.f32 %v156, %v175
    %177 = vmatmul.f32.gmra.mxu0 %v92
    %v178 = vpop.f32.mrf.mxu0
    %v179 = vadd.f32 %v156, %v178
    %180 = vmatmul.f32.gmra.mxu0 %v94
    %v181 = vpop.f32.mrf.mxu0
    %v182 = vadd.f32 %v156, %v181
    %183 = vmatmul.f32.gmra.mxu0 %v96
    %v184 = vpop.f32.mrf.mxu0
    %v185 = vadd.f32 %v156, %v184
    %186 = vmatmul.f32.gmra.mxu0 %v98
    %v187 = vpop.f32.mrf.mxu0
    %v188 = vadd.f32 %v156, %v187
    %189 = vmatmul.f32.gmra.mxu0 %v100
    %v190 = vpop.f32.mrf.mxu0
    %v191 = vadd.f32 %v156, %v190
    %192 = vmatmul.f32.gmra.mxu0 %v102
    %v193 = vpop.f32.mrf.mxu0
    %v194 = vadd.f32 %v156, %v193
    %195 = vmatmul.f32.gmra.mxu0 %v104
    %v196 = vpop.f32.mrf.mxu0
    %v197 = vadd.f32 %v156, %v196
    %198 = vmatmul.f32.gmra.mxu0 %v106
    %v199 = vpop.f32.mrf.mxu0
    %v200 = vadd.f32 %v156, %v199
    %201 = vmatmul.f32.gmra.mxu0 %v108
    %v202 = vpop.f32.mrf.mxu0
    %v203 = vadd.f32 %v156, %v202
    %204 = vmatmul.f32.gmra.mxu0 %v110
    %v205 = vpop.f32.mrf.mxu0
    %v206 = vadd.f32 %v156, %v205
    %207 = vmatmul.f32.gmra.mxu0 %v112
    %v208 = vpop.f32.mrf.mxu0
    %v209 = vadd.f32 %v156, %v208
    %210 = vmatmul.f32.gmra.mxu0 %v114
    %v211 = vpop.f32.mrf.mxu0
    %v212 = vadd.f32 %v156, %v211
    %213 = vmatmul.f32.gmra.mxu0 %v116
    %v214 = vpop.f32.mrf.mxu0
    %v215 = vadd.f32 %v156, %v214
    %216 = vmatmul.f32.gmra.mxu0 %v118
    %v217 = vpop.f32.mrf.mxu0
    %v218 = vadd.f32 %v156, %v217
    %219 = vmatmul.f32.gmra.mxu0 %v120
    %v220 = vpop.f32.mrf.mxu0
    %v221 = vadd.f32 %v156, %v220
    %222 = vdwg.mxu0
    %223 = vmatpush.msra.mxu0 %v153
    %224 = vmatpush.msra.mxu0 %v152
    %225 = vmatpush.msra.mxu0 %v151
    %226 = vmatpush.msra.mxu0 %v150
    %227 = vmatpush.msra.mxu0 %v149
    %228 = vmatpush.msra.mxu0 %v148
    %229 = vmatpush.msra.mxu0 %v147
    %230 = vmatpush.msra.mxu0 %v146
    %231 = vmatpush.msra.mxu0 %v145
    %232 = vmatpush.msra.mxu0 %v144
    %233 = vmatpush.msra.mxu0 %v143
    %234 = vmatpush.msra.mxu0 %v142
    %235 = vmatpush.msra.mxu0 %v141
    %236 = vmatpush.msra.mxu0 %v140
    %237 = vmatpush.msra.mxu0 %v139
    %238 = vmatpush.msra.mxu0 %v138
    %239 = vmatmul.f32.gmra.mxu0 %v91
    %v240 = vpop.f32.mrf.mxu0
    %v241 = vadd.f32 %v176, %v240
    %242 = vmatmul.f32.gmra.mxu0 %v93
    %v243 = vpop.f32.mrf.mxu0
    %v244 = vadd.f32 %v179, %v243
    %245 = vmatmul.f32.gmra.mxu0 %v95
    %v246 = vpop.f32.mrf.mxu0
    %v247 = vadd.f32 %v182, %v246
    %248 = vmatmul.f32.gmra.mxu0 %v97
    %v249 = vpop.f32.mrf.mxu0
    %v250 = vadd.f32 %v185, %v249
    %251 = vmatmul.f32.gmra.mxu0 %v99
    %v252 = vpop.f32.mrf.mxu0
    %v253 = vadd.f32 %v188, %v252
    %254 = vmatmul.f32.gmra.mxu0 %v101
    %v255 = vpop.f32.mrf.mxu0
    %v256 = vadd.f32 %v191, %v255
    %257 = vmatmul.f32.gmra.mxu0 %v103
    %v258 = vpop.f32.mrf.mxu0
    %v259 = vadd.f32 %v194, %v258
    %260 = vmatmul.f32.gmra.mxu0 %v105
    %v261 = vpop.f32.mrf.mxu0
    %v262 = vadd.f32 %v197, %v261
    %263 = vmatmul.f32.gmra.mxu0 %v107
    %v264 = vpop.f32.mrf.mxu0
    %v265 = vadd.f32 %v200, %v264
    %266 = vmatmul.f32.gmra.mxu0 %v109
    %v267 = vpop.f32.mrf.mxu0
    %v268 = vadd.f32 %v203, %v267
    %269 = vmatmul.f32.gmra.mxu0 %v111
    %v270 = vpop.f32.mrf.mxu0
    %v271 = vadd.f32 %v206, %v270
    %272 = vmatmul.f32.gmra.mxu0 %v113
    %v273 = vpop.f32.mrf.mxu0
    %v274 = vadd.f32 %v209, %v273
    %275 = vmatmul.f32.gmra.mxu0 %v115
    %v276 = vpop.f32.mrf.mxu0
    %v277 = vadd.f32 %v212, %v276
    %278 = vmatmul.f32.gmra.mxu0 %v117
    %v279 = vpop.f32.mrf.mxu0
    %v280 = vadd.f32 %v215, %v279
    %281 = vmatmul.f32.gmra.mxu0 %v119
    %v282 = vpop.f32.mrf.mxu0
    %v283 = vadd.f32 %v218, %v282
    %284 = vmatmul.f32.gmra.mxu0 %v121
    %v285 = vpop.f32.mrf.mxu0
    %v286 = vadd.f32 %v221, %v285
    %287 = vdwg.mxu0
    %v288 = vmax.f32 %v241, 0.0
    %v289 = vmax.f32 %v244, 0.0
    %v290 = vmax.f32 %v247, 0.0
    %v291 = vmax.f32 %v250, 0.0
    %v292 = vmax.f32 %v253, 0.0
    %v293 = vmax.f32 %v256, 0.0
    %v294 = vmax.f32 %v259, 0.0
    %v295 = vmax.f32 %v262, 0.0
    %v296 = vmax.f32 %v265, 0.0
    %v297 = vmax.f32 %v268, 0.0
    %v298 = vmax.f32 %v271, 0.0
    %v299 = vmax.f32 %v274, 0.0
    %v300 = vmax.f32 %v277, 0.0
    %v301 = vmax.f32 %v280, 0.0
    %v302 = vmax.f32 %v283, 0.0
    %v303 = vmax.f32 %v286, 0.0
    %v304 = vld [vmem:[#allocation7] sm:$0xff]
    %v305 = vld [vmem:[#allocation7 + $0x8] sm:$0xff]
    %v306 = vld [vmem:[#allocation7 + $0x10] sm:$0xff]
    %v307 = vld [vmem:[#allocation7 + $0x18] sm:$0xff]
    %v308 = vld [vmem:[#allocation7 + $0x20] sm:$0xff]
    %v309 = vld [vmem:[#allocation7 + $0x28] sm:$0xff]
    %v310 = vld [vmem:[#allocation7 + $0x30] sm:$0xff]
    %v311 = vld [vmem:[#allocation7 + $0x38] sm:$0xff]
    %v312 = vld [vmem:[#allocation7 + $0x40] sm:$0xff]
    %v313 = vld [vmem:[#allocation7 + $0x48] sm:$0xff]
    %v314 = vld [vmem:[#allocation7 + $0x50] sm:$0xff]
    %v315 = vld [vmem:[#allocation7 + $0x58] sm:$0xff]
    %v316 = vld [vmem:[#allocation7 + $0x60] sm:$0xff]
    %v317 = vld [vmem:[#allocation7 + $0x68] sm:$0xff]
    %v318 = vld [vmem:[#allocation7 + $0x70] sm:$0xff]
    %v319 = vld [vmem:[#allocation7 + $0x78] sm:$0xff]
    %v320 = vld [vmem:[%s4] sm:$0x1]
    %v322 = vperm.slane %v320, 0
    %324 = vmatpush.msra.mxu0 %v319
    %325 = vmatpush.msra.mxu0 %v318
    %326 = vmatpush.msra.mxu0 %v317
    %327 = vmatpush.msra.mxu0 %v316
    %328 = vmatpush.msra.mxu0 %v315
    %329 = vmatpush.msra.mxu0 %v314
    %330 = vmatpush.msra.mxu0 %v313
    %331 = vmatpush.msra.mxu0 %v312
    %332 = vmatpush.msra.mxu0 %v311
    %333 = vmatpush.msra.mxu0 %v310
    %334 = vmatpush.msra.mxu0 %v309
    %335 = vmatpush.msra.mxu0 %v308
    %336 = vmatpush.msra.mxu0 %v307
    %337 = vmatpush.msra.mxu0 %v306
    %338 = vmatpush.msra.mxu0 %v305
    %339 = vmatpush.msra.mxu0 %v304
    %340 = vmatmul.f32.gmra.mxu0 %v288
    %v341 = vpop.f32.mrf.mxu0
    %v342 = vadd.f32 %v322, %v341
    %343 = vmatmul.f32.gmra.mxu0 %v289
    %v344 = vpop.f32.mrf.mxu0
    %v345 = vadd.f32 %v322, %v344
    %346 = vmatmul.f32.gmra.mxu0 %v290
    %v347 = vpop.f32.mrf.mxu0
    %v348 = vadd.f32 %v322, %v347
    %349 = vmatmul.f32.gmra.mxu0 %v291
    %v350 = vpop.f32.mrf.mxu0
    %v351 = vadd.f32 %v322, %v350
    %352 = vmatmul.f32.gmra.mxu0 %v292
    %v353 = vpop.f32.mrf.mxu0
    %v354 = vadd.f32 %v322, %v353
    %355 = vmatmul.f32.gmra.mxu0 %v293
    %v356 = vpop.f32.mrf.mxu0
    %v357 = vadd.f32 %v322, %v356
    %358 = vmatmul.f32.gmra.mxu0 %v294
    %v359 = vpop.f32.mrf.mxu0
    %v360 = vadd.f32 %v322, %v359
    %361 = vmatmul.f32.gmra.mxu0 %v295
    %v362 = vpop.f32.mrf.mxu0
    %v363 = vadd.f32 %v322, %v362
    %364 = vmatmul.f32.gmra.mxu0 %v296
    %v365 = vpop.f32.mrf.mxu0
    %v366 = vadd.f32 %v322, %v365
    %367 = vmatmul.f32.gmra.mxu0 %v297
    %v368 = vpop.f32.mrf.mxu0
    %v369 = vadd.f32 %v322, %v368
    %370 = vmatmul.f32.gmra.mxu0 %v298
    %v371 = vpop.f32.mrf.mxu0
    %v372 = vadd.f32 %v322, %v371
    %373 = vmatmul.f32.gmra.mxu0 %v299
    %v374 = vpop.f32.mrf.mxu0
    %v375 = vadd.f32 %v322, %v374
    %376 = vmatmul.f32.gmra.mxu0 %v300
    %v377 = vpop.f32.mrf.mxu0
    %v378 = vadd.f32 %v322, %v377
    %379 = vmatmul.f32.gmra.mxu0 %v301
    %v380 = vpop.f32.mrf.mxu0
    %v381 = vadd.f32 %v322, %v380
    %382 = vmatmul.f32.gmra.mxu0 %v302
    %v383 = vpop.f32.mrf.mxu0
    %v384 = vadd.f32 %v322, %v383
    %385 = vmatmul.f32.gmra.mxu0 %v303
    %v386 = vpop.f32.mrf.mxu0
    %v387 = vadd.f32 %v322, %v386
    %388 = vdwg.mxu0
    %v389 = vmax.f32 %v342, 0.0
    %v390 = vmax.f32 %v345, 0.0
    %v391 = vmax.f32 %v348, 0.0
    %v392 = vmax.f32 %v351, 0.0
    %v393 = vmax.f32 %v354, 0.0
    %v394 = vmax.f32 %v357, 0.0
    %v395 = vmax.f32 %v360, 0.0
    %v396 = vmax.f32 %v363, 0.0
    %v397 = vmax.f32 %v366, 0.0
    %v398 = vmax.f32 %v369, 0.0
    %v399 = vmax.f32 %v372, 0.0
    %v400 = vmax.f32 %v375, 0.0
    %v401 = vmax.f32 %v378, 0.0
    %v402 = vmax.f32 %v381, 0.0
    %v403 = vmax.f32 %v384, 0.0
    %v404 = vmax.f32 %v387, 0.0
    %v405 = vld [vmem:[#allocation8] sm:$0xff]
    %v406 = vld [vmem:[#allocation8 + $0x8] sm:$0xff]
    %v407 = vld [vmem:[#allocation8 + $0x10] sm:$0xff]
    %v408 = vld [vmem:[#allocation8 + $0x18] sm:$0xff]
    %v409 = vld [vmem:[#allocation8 + $0x20] sm:$0xff]
    %v410 = vld [vmem:[#allocation8 + $0x28] sm:$0xff]
    %v411 = vld [vmem:[#allocation8 + $0x30] sm:$0xff]
    %v412 = vld [vmem:[#allocation8 + $0x38] sm:$0xff]
    %v413 = vld [vmem:[#allocation8 + $0x40] sm:$0xff]
    %v414 = vld [vmem:[#allocation8 + $0x48] sm:$0xff]
    %v415 = vld [vmem:[#allocation8 + $0x50] sm:$0xff]
    %v416 = vld [vmem:[#allocation8 + $0x58] sm:$0xff]
    %v417 = vld [vmem:[#allocation8 + $0x60] sm:$0xff]
    %v418 = vld [vmem:[#allocation8 + $0x68] sm:$0xff]
    %v419 = vld [vmem:[#allocation8 + $0x70] sm:$0xff]
    %v420 = vld [vmem:[#allocation8 + $0x78] sm:$0xff]
    %v421 = vld [vmem:[%s6] sm:$0x1]
    %v423 = vperm.slane %v421, 0
    %425 = vmatpush.msra.mxu0 %v420
    %426 = vmatpush.msra.mxu0 %v419
    %427 = vmatpush.msra.mxu0 %v418
    %428 = vmatpush.msra.mxu0 %v417
    %429 = vmatpush.msra.mxu0 %v416
    %430 = vmatpush.msra.mxu0 %v415
    %431 = vmatpush.msra.mxu0 %v414
    %432 = vmatpush.msra.mxu0 %v413
    %433 = vmatpush.msra.mxu0 %v412
    %434 = vmatpush.msra.mxu0 %v411
    %435 = vmatpush.msra.mxu0 %v410
    %436 = vmatpush.msra.mxu0 %v409
    %437 = vmatpush.msra.mxu0 %v408
    %438 = vmatpush.msra.mxu0 %v407
    %439 = vmatpush.msra.mxu0 %v406
    %440 = vmatpush.msra.mxu0 %v405
    %441 = vmatmul.f32.gmra.mxu0 %v389
    %v442 = vpop.f32.mrf.mxu0
    %v443 = vadd.f32 %v423, %v442
    %444 = vmatmul.f32.gmra.mxu0 %v390
    %v445 = vpop.f32.mrf.mxu0
    %v446 = vadd.f32 %v423, %v445
    %447 = vmatmul.f32.gmra.mxu0 %v391
    %v448 = vpop.f32.mrf.mxu0
    %v449 = vadd.f32 %v423, %v448
    %450 = vmatmul.f32.gmra.mxu0 %v392
    %v451 = vpop.f32.mrf.mxu0
    %v452 = vadd.f32 %v423, %v451
    %453 = vmatmul.f32.gmra.mxu0 %v393
    %v454 = vpop.f32.mrf.mxu0
    %v455 = vadd.f32 %v423, %v454
    %456 = vmatmul.f32.gmra.mxu0 %v394
    %v457 = vpop.f32.mrf.mxu0
    %v458 = vadd.f32 %v423, %v457
    %459 = vmatmul.f32.gmra.mxu0 %v395
    %v460 = vpop.f32.mrf.mxu0
    %v461 = vadd.f32 %v423, %v460
    %462 = vmatmul.f32.gmra.mxu0 %v396
    %v463 = vpop.f32.mrf.mxu0
    %v464 = vadd.f32 %v423, %v463
    %465 = vmatmul.f32.gmra.mxu0 %v397
    %v466 = vpop.f32.mrf.mxu0
    %v467 = vadd.f32 %v423, %v466
    %468 = vmatmul.f32.gmra.mxu0 %v398
    %v469 = vpop.f32.mrf.mxu0
    %v470 = vadd.f32 %v423, %v469
    %471 = vmatmul.f32.gmra.mxu0 %v399
    %v472 = vpop.f32.mrf.mxu0
    %v473 = vadd.f32 %v423, %v472
    %474 = vmatmul.f32.gmra.mxu0 %v400
    %v475 = vpop.f32.mrf.mxu0
    %v476 = vadd.f32 %v423, %v475
    %477 = vmatmul.f32.gmra.mxu0 %v401
    %v478 = vpop.f32.mrf.mxu0
    %v479 = vadd.f32 %v423, %v478
    %480 = vmatmul.f32.gmra.mxu0 %v402
    %v481 = vpop.f32.mrf.mxu0
    %v482 = vadd.f32 %v423, %v481
    %483 = vmatmul.f32.gmra.mxu0 %v403
    %v484 = vpop.f32.mrf.mxu0
    %v485 = vadd.f32 %v423, %v484
    %486 = vmatmul.f32.gmra.mxu0 %v404
    %v487 = vpop.f32.mrf.mxu0
    %v488 = vadd.f32 %v423, %v487
    %489 = vdwg.mxu0
    %490 = vst [vmem:[#allocation10] sm:$0xff] %v443
    %491 = vst [vmem:[#allocation10 + $0x8] sm:$0xff] %v446
    %492 = vst [vmem:[#allocation10 + $0x10] sm:$0xff] %v449
    %493 = vst [vmem:[#allocation10 + $0x18] sm:$0xff] %v452
    %494 = vst [vmem:[#allocation10 + $0x20] sm:$0xff] %v455
    %495 = vst [vmem:[#allocation10 + $0x28] sm:$0xff] %v458
    %496 = vst [vmem:[#allocation10 + $0x30] sm:$0xff] %v461
    %497 = vst [vmem:[#allocation10 + $0x38] sm:$0xff] %v464
    %498 = vst [vmem:[#allocation10 + $0x40] sm:$0xff] %v467
    %499 = vst [vmem:[#allocation10 + $0x48] sm:$0xff] %v470
    %500 = vst [vmem:[#allocation10 + $0x50] sm:$0xff] %v473
    %501 = vst [vmem:[#allocation10 + $0x58] sm:$0xff] %v476
    %502 = vst [vmem:[#allocation10 + $0x60] sm:$0xff] %v479
    %503 = vst [vmem:[#allocation10 + $0x68] sm:$0xff] %v482
    %504 = vst [vmem:[#allocation10 + $0x70] sm:$0xff] %v485
    %505 = vst [vmem:[#allocation10 + $0x78] sm:$0xff] %v488
    // Predicated region
    $region46: #{tpu_custom_call.1} parent=1 // pred_check
      _
    $region47: #{tpu_custom_call.1} parent=1 // pred_check_branch
      %507 = sbr.rel (0) target = $region49
    $region48: #{tpu_custom_call.1} parent=1 // pred_region
      %509 = vsyncadd [#allocation4], 0
      %s510 = sshll.u32 [#allocation10], 4
      %s511 = int_to_ptr.vmem [resolvable:$true] %s510
      %s512 = sshll.u32 %s7, 4
      %s513 = int_to_ptr.hbm [resolvable:$true] %s512
      %518 = dma.vmem_to_hbm [thread:$0]  %s511, 2048, %s513, [#allocation4], 128, 128, 8
    $region49: #{tpu_custom_call.1} parent=1 // pred_fallthru
      _
    // Predicated region
    $region50: #{tpu_custom_call.1} parent=1 // pred_check
      _
    $region51: #{tpu_custom_call.1} parent=1 // pred_check_branch
      %520 = sbr.rel (0) target = $region53
    $region52: #{tpu_custom_call.1} parent=1 // pred_region
      %522 = dma.done [#allocation4], 2048
    $region53: #{tpu_custom_call.1} parent=1 // pred_fallthru
      _
    %523 = vsyncpa [#allocation3], 1
    %524 = vsyncpa [#allocation6], 1
    %525 = vsyncpa [#allocation9], 1
    %526 = vsyncpa [#allocation4], 1

// kernel: tpu_custom_call.1
$region0: #{tpu_custom_call.1}
  #allocation0 [shape = 'u32[]', space=smem, size = 0x4, offset = 0x4, fixed_abs, tag = 'smem constant byte address 0x4 - core index']
  #allocation1 [shape = 'u32[72,128]{1,0:T(1,128)}', space=vmem, size = 0x9000, scoped, tag = 'internal scratch']
  %s0 = inlined_call_operand.hbm [shape: f32[128,256], index: 0, kind: input, shape index: {}]
  %s1 = inlined_call_operand.hbm [shape: f32[256,128], index: 1, kind: input, shape index: {}]
  %s2 = inlined_call_operand.vmem [shape: f32[1,128], index: 2, kind: input, shape index: {}]
  %s3 = inlined_call_operand.hbm [shape: f32[128,128], index: 3, kind: input, shape index: {}]
  %s4 = inlined_call_operand.vmem [shape: f32[1,128], index: 4, kind: input, shape index: {}]
  %s5 = inlined_call_operand.hbm [shape: f32[128,128], index: 5, kind: input, shape index: {}]
  %s6 = inlined_call_operand.vmem [shape: f32[1,128], index: 6, kind: input, shape index: {}]
  %s7 = inlined_call_operand.hbm [shape: f32[128,128], index: 7, kind: output, shape index: {}]
  %s8 = sld [smem:[#allocation0]]
  $region54: #{tpu_custom_call.1} parent=0
    _
  %s10 = ssub.s32 1, %s8
  %s11 = scalar_select 0, %s10, %s8
  $region1: #{tpu_custom_call.1} parent=0
    #allocation2 [shape = 'u8[131072]{0}', space=vmem, size = 0x20000, scoped, tag = 'input window, operand 0, single buffered']
    #allocation3 [shape = 's32[1]{0}', space=sflag, size = 0x4, scoped, tag = 'scoped memory for tpu_custom_call.1']
    #allocation4 [shape = 's32[1]{0}', space=sflag, size = 0x4, scoped, tag = 'scoped memory for tpu_custom_call.1']
    #allocation5 [shape = 'u8[131072]{0}', space=vmem, size = 0x20000, scoped, tag = 'input window, operand 1, single buffered']
    #allocation6 [shape = 's32[1]{0}', space=sflag, size = 0x4, scoped, tag = 'scoped memory for tpu_custom_call.1']
    #allocation7 [shape = 'u8[65536]{0}', space=vmem, size = 0x10000, scoped, tag = 'input window, operand 3, single buffered']
    #allocation8 [shape = 'u8[65536]{0}', space=vmem, size = 0x10000, scoped, tag = 'input window, operand 5, single buffered']
    #allocation9 [shape = 's32[1]{0}', space=sflag, size = 0x4, scoped, tag = 'scoped memory for tpu_custom_call.1']
    #allocation10 [shape = 'u8[65536]{0}', space=vmem, size = 0x10000, scoped, tag = 'output window, operand 0, single buffered']
    %12 = vsyncpa [#allocation3], 0
    %13 = vsyncpa [#allocation6], 0
    %14 = vsyncpa [#allocation9], 0
    %15 = vsyncpa [#allocation4], 0
    // Predicated region
    $region2: #{tpu_custom_call.1} parent=1 // pred_check
      _
    $region3: #{tpu_custom_call.1} parent=1 // pred_check_branch
      %17 = sbr.rel (0) target = $region5
    $region4: #{tpu_custom_call.1} parent=1 // pred_region
      %19 = vsyncadd [#allocation3], 0
      %s20 = sshll.u32 %s0, 4
      %s21 = int_to_ptr.hbm [resolvable:$true] %s20
      %s22 = sshll.u32 [#allocation2], 4
      %s23 = int_to_ptr.vmem [resolvable:$true] %s22
      %28 = dma.hbm_to_vmem [thread:$0]  %s21, 4096, %s23, [#allocation3], 256, 256, 16
    $region5: #{tpu_custom_call.1} parent=1 // pred_fallthru
      _
    // Predicated region
    $region6: #{tpu_custom_call.1} parent=1 // pred_check
      _
    $region7: #{tpu_custom_call.1} parent=1 // pred_check_branch
      %30 = sbr.rel (0) target = $region9
    $region8: #{tpu_custom_call.1} parent=1 // pred_region
      %32 = vsyncadd [#allocation6], 0
      %s33 = sshll.u32 %s1, 4
      %s34 = int_to_ptr.hbm [resolvable:$true] %s33
      %s35 = sshll.u32 [#allocation5], 4
      %s36 = int_to_ptr.vmem [resolvable:$true] %s35
      %41 = dma.hbm_to_vmem [thread:$0]  %s34, 4096, %s36, [#allocation6], 128, 128, 8
    $region9: #{tpu_custom_call.1} parent=1 // pred_fallthru
      _
    // Predicated region
    $region10: #{tpu_custom_call.1} parent=1 // pred_check
      _
    $region11: #{tpu_custom_call.1} parent=1 // pred_check_branch
      %43 = sbr.rel (0) target = $region13
    $region12: #{tpu_custom_call.1} parent=1 // pred_region
      _
    $region13: #{tpu_custom_call.1} parent=1 // pred_fallthru
      _
    // Predicated region
    $region14: #{tpu_custom_call.1} parent=1 // pred_check
      _
    $region15: #{tpu_custom_call.1} parent=1 // pred_check_branch
      %45 = sbr.rel (0) target = $region17
    $region16: #{tpu_custom_call.1} parent=1 // pred_region
      %47 = vsyncadd [#allocation6], 0
      %s48 = sshll.u32 %s3, 4
      %s49 = int_to_ptr.hbm [resolvable:$true] %s48
      %s50 = sshll.u32 [#allocation7], 4
      %s51 = int_to_ptr.vmem [resolvable:$true] %s50
      %56 = dma.hbm_to_vmem [thread:$0]  %s49, 2048, %s51, [#allocation6], 128, 128, 8
    $region17: #{tpu_custom_call.1} parent=1 // pred_fallthru
      _
    // Predicated region
    $region18: #{tpu_custom_call.1} parent=1 // pred_check
      _
    $region19: #{tpu_custom_call.1} parent=1 // pred_check_branch
      %58 = sbr.rel (0) target = $region21
    $region20: #{tpu_custom_call.1} parent=1 // pred_region
      _
    $region21: #{tpu_custom_call.1} parent=1 // pred_fallthru
      _
    // Predicated region
    $region22: #{tpu_custom_call.1} parent=1 // pred_check
      _
    $region23: #{tpu_custom_call.1} parent=1 // pred_check_branch
      %60 = sbr.rel (0) target = $region25
    $region24: #{tpu_custom_call.1} parent=1 // pred_region
      %62 = vsyncadd [#allocation9], 0
      %s63 = sshll.u32 %s5, 4
      %s64 = int_to_ptr.hbm [resolvable:$true] %s63
      %s65 = sshll.u32 [#allocation8], 4
      %s66 = int_to_ptr.vmem [resolvable:$true] %s65
      %71 = dma.hbm_to_vmem [thread:$0]  %s64, 2048, %s66, [#allocation9], 128, 128, 8
    $region25: #{tpu_custom_call.1} parent=1 // pred_fallthru
      _
    // Predicated region
    $region26: #{tpu_custom_call.1} parent=1 // pred_check
      _
    $region27: #{tpu_custom_call.1} parent=1 // pred_check_branch
      %73 = sbr.rel (0) target = $region29
    $region28: #{tpu_custom_call.1} parent=1 // pred_region
      _
    $region29: #{tpu_custom_call.1} parent=1 // pred_fallthru
      _
    // Predicated region
    $region30: #{tpu_custom_call.1} parent=1 // pred_check
      _
    $region31: #{tpu_custom_call.1} parent=1 // pred_check_branch
      %75 = sbr.rel (0) target = $region33
    $region32: #{tpu_custom_call.1} parent=1 // pred_region
      %77 = dma.done [#allocation3], 4096
    $region33: #{tpu_custom_call.1} parent=1 // pred_fallthru
      _
    // Predicated region
    $region34: #{tpu_custom_call.1} parent=1 // pred_check
      _
    $region35: #{tpu_custom_call.1} parent=1 // pred_check_branch
      %79 = sbr.rel (0) target = $region37
    $region36: #{tpu_custom_call.1} parent=1 // pred_region
      %81 = dma.done [#allocation6], 4096
    $region37: #{tpu_custom_call.1} parent=1 // pred_fallthru
      _
    // Predicated region
    $region38: #{tpu_custom_call.1} parent=1 // pred_check
      _
    $region39: #{tpu_custom_call.1} parent=1 // pred_check_branch
      %83 = sbr.rel (0) target = $region41
    $region40: #{tpu_custom_call.1} parent=1 // pred_region
      %85 = dma.done [#allocation6], 2048
    $region41: #{tpu_custom_call.1} parent=1 // pred_fallthru
      _
    // Predicated region
    $region42: #{tpu_custom_call.1} parent=1 // pred_check
      _
    $region43: #{tpu_custom_call.1} parent=1 // pred_check_branch
      %87 = sbr.rel (0) target = $region45
    $region44: #{tpu_custom_call.1} parent=1 // pred_region
      %89 = dma.done [#allocation9], 2048
    $region45: #{tpu_custom_call.1} parent=1 // pred_fallthru
      _
    %v90 = vld [vmem:[#allocation2] sm:$0xff]
    %v91 = vld [vmem:[#allocation2 + $0x8] sm:$0xff]
    %v92 = vld [vmem:[#allocation2 + $0x10] sm:$0xff]
    %v93 = vld [vmem:[#allocation2 + $0x18] sm:$0xff]
    %v94 = vld [vmem:[#allocation2 + $0x20] sm:$0xff]
    %v95 = vld [vmem:[#allocation2 + $0x28] sm:$0xff]
    %v96 = vld [vmem:[#allocation2 + $0x30] sm:$0xff]
    %v97 = vld [vmem:[#allocation2 + $0x38] sm:$0xff]
    %v98 = vld [vmem:[#allocation2 + $0x40] sm:$0xff]
    %v99 = vld [vmem:[#allocation2 + $0x48] sm:$0xff]
    %v100 = vld [vmem:[#allocation2 + $0x50] sm:$0xff]
    %v101 = vld [vmem:[#allocation2 + $0x58] sm:$0xff]
    %v102 = vld [vmem:[#allocation2 + $0x60] sm:$0xff]
    %v103 = vld [vmem:[#allocation2 + $0x68] sm:$0xff]
    %v104 = vld [vmem:[#allocation2 + $0x70] sm:$0xff]
    %v105 = vld [vmem:[#allocation2 + $0x78] sm:$0xff]
    %v106 = vld [vmem:[#allocation2 + $0x80] sm:$0xff]
    %v107 = vld [vmem:[#allocation2 + $0x88] sm:$0xff]
    %v108 = vld [vmem:[#allocation2 + $0x90] sm:$0xff]
    %v109 = vld [vmem:[#allocation2 + $0x98] sm:$0xff]
    %v110 = vld [vmem:[#allocation2 + $0xa0] sm:$0xff]
    %v111 = vld [vmem:[#allocation2 + $0xa8] sm:$0xff]
    %v112 = vld [vmem:[#allocation2 + $0xb0] sm:$0xff]
    %v113 = vld [vmem:[#allocation2 + $0xb8] sm:$0xff]
    %v114 = vld [vmem:[#allocation2 + $0xc0] sm:$0xff]
    %v115 = vld [vmem:[#allocation2 + $0xc8] sm:$0xff]
    %v116 = vld [vmem:[#allocation2 + $0xd0] sm:$0xff]
    %v117 = vld [vmem:[#allocation2 + $0xd8] sm:$0xff]
    %v118 = vld [vmem:[#allocation2 + $0xe0] sm:$0xff]
    %v119 = vld [vmem:[#allocation2 + $0xe8] sm:$0xff]
    %v120 = vld [vmem:[#allocation2 + $0xf0] sm:$0xff]
    %v121 = vld [vmem:[#allocation2 + $0xf8] sm:$0xff]
    %v122 = vld [vmem:[#allocation5] sm:$0xff]
    %v123 = vld [vmem:[#allocation5 + $0x8] sm:$0xff]
    %v124 = vld [vmem:[#allocation5 + $0x10] sm:$0xff]
    %v125 = vld [vmem:[#allocation5 + $0x18] sm:$0xff]
    %v126 = vld [vmem:[#allocation5 + $0x20] sm:$0xff]
    %v127 = vld [vmem:[#allocation5 + $0x28] sm:$0xff]
    %v128 = vld [vmem:[#allocation5 + $0x30] sm:$0xff]
    %v129 = vld [vmem:[#allocation5 + $0x38] sm:$0xff]
    %v130 = vld [vmem:[#allocation5 + $0x40] sm:$0xff]
    %v131 = vld [vmem:[#allocation5 + $0x48] sm:$0xff]
    %v132 = vld [vmem:[#allocation5 + $0x50] sm:$0xff]
    %v133 = vld [vmem:[#allocation5 + $0x58] sm:$0xff]
    %v134 = vld [vmem:[#allocation5 + $0x60] sm:$0xff]
    %v135 = vld [vmem:[#allocation5 + $0x68] sm:$0xff]
    %v136 = vld [vmem:[#allocation5 + $0x70] sm:$0xff]
    %v137 = vld [vmem:[#allocation5 + $0x78] sm:$0xff]
    %v138 = vld [vmem:[#allocation5 + $0x80] sm:$0xff]
    %v139 = vld [vmem:[#allocation5 + $0x88] sm:$0xff]
    %v140 = vld [vmem:[#allocation5 + $0x90] sm:$0xff]
    %v141 = vld [vmem:[#allocation5 + $0x98] sm:$0xff]
    %v142 = vld [vmem:[#allocation5 + $0xa0] sm:$0xff]
    %v143 = vld [vmem:[#allocation5 + $0xa8] sm:$0xff]
    %v144 = vld [vmem:[#allocation5 + $0xb0] sm:$0xff]
    %v145 = vld [vmem:[#allocation5 + $0xb8] sm:$0xff]
    %v146 = vld [vmem:[#allocation5 + $0xc0] sm:$0xff]
    %v147 = vld [vmem:[#allocation5 + $0xc8] sm:$0xff]
    %v148 = vld [vmem:[#allocation5 + $0xd0] sm:$0xff]
    %v149 = vld [vmem:[#allocation5 + $0xd8] sm:$0xff]
    %v150 = vld [vmem:[#allocation5 + $0xe0] sm:$0xff]
    %v151 = vld [vmem:[#allocation5 + $0xe8] sm:$0xff]
    %v152 = vld [vmem:[#allocation5 + $0xf0] sm:$0xff]
    %v153 = vld [vmem:[#allocation5 + $0xf8] sm:$0xff]
    %v154 = vld [vmem:[%s2] sm:$0x1]
    %v156 = vperm.slane %v154, 0
    %158 = vmatpush.msra.mxu0 %v137
    %159 = vmatpush.msra.mxu0 %v136
    %160 = vmatpush.msra.mxu0 %v135
    %161 = vmatpush.msra.mxu0 %v134
    %162 = vmatpush.msra.mxu0 %v133
    %163 = vmatpush.msra.mxu0 %v132
    %164 = vmatpush.msra.mxu0 %v131
    %165 = vmatpush.msra.mxu0 %v130
    %166 = vmatpush.msra.mxu0 %v129
    %167 = vmatpush.msra.mxu0 %v128
    %168 = vmatpush.msra.mxu0 %v127
    %169 = vmatpush.msra.mxu0 %v126
    %170 = vmatpush.msra.mxu0 %v125
    %171 = vmatpush.msra.mxu0 %v124
    %172 = vmatpush.msra.mxu0 %v123
    %173 = vmatpush.msra.mxu0 %v122
    %174 = vmatmul.f32.gmra.mxu0 %v90
    %v175 = vpop.f32.mrf.mxu0
    %v176 = vadd.f32 %v156, %v175
    %177 = vmatmul.f32.gmra.mxu0 %v92
    %v178 = vpop.f32.mrf.mxu0
    %v179 = vadd.f32 %v156, %v178
    %180 = vmatmul.f32.gmra.mxu0 %v94
    %v181 = vpop.f32.mrf.mxu0
    %v182 = vadd.f32 %v156, %v181
    %183 = vmatmul.f32.gmra.mxu0 %v96
    %v184 = vpop.f32.mrf.mxu0
    %v185 = vadd.f32 %v156, %v184
    %186 = vmatmul.f32.gmra.mxu0 %v98
    %v187 = vpop.f32.mrf.mxu0
    %v188 = vadd.f32 %v156, %v187
    %189 = vmatmul.f32.gmra.mxu0 %v100
    %v190 = vpop.f32.mrf.mxu0
    %v191 = vadd.f32 %v156, %v190
    %192 = vmatmul.f32.gmra.mxu0 %v102
    %v193 = vpop.f32.mrf.mxu0
    %v194 = vadd.f32 %v156, %v193
    %195 = vmatmul.f32.gmra.mxu0 %v104
    %v196 = vpop.f32.mrf.mxu0
    %v197 = vadd.f32 %v156, %v196
    %198 = vmatmul.f32.gmra.mxu0 %v106
    %v199 = vpop.f32.mrf.mxu0
    %v200 = vadd.f32 %v156, %v199
    %201 = vmatmul.f32.gmra.mxu0 %v108
    %v202 = vpop.f32.mrf.mxu0
    %v203 = vadd.f32 %v156, %v202
    %204 = vmatmul.f32.gmra.mxu0 %v110
    %v205 = vpop.f32.mrf.mxu0
    %v206 = vadd.f32 %v156, %v205
    %207 = vmatmul.f32.gmra.mxu0 %v112
    %v208 = vpop.f32.mrf.mxu0
    %v209 = vadd.f32 %v156, %v208
    %210 = vmatmul.f32.gmra.mxu0 %v114
    %v211 = vpop.f32.mrf.mxu0
    %v212 = vadd.f32 %v156, %v211
    %213 = vmatmul.f32.gmra.mxu0 %v116
    %v214 = vpop.f32.mrf.mxu0
    %v215 = vadd.f32 %v156, %v214
    %216 = vmatmul.f32.gmra.mxu0 %v118
    %v217 = vpop.f32.mrf.mxu0
    %v218 = vadd.f32 %v156, %v217
    %219 = vmatmul.f32.gmra.mxu0 %v120
    %v220 = vpop.f32.mrf.mxu0
    %v221 = vadd.f32 %v156, %v220
    %222 = vdwg.mxu0
    %223 = vmatpush.msra.mxu0 %v153
    %224 = vmatpush.msra.mxu0 %v152
    %225 = vmatpush.msra.mxu0 %v151
    %226 = vmatpush.msra.mxu0 %v150
    %227 = vmatpush.msra.mxu0 %v149
    %228 = vmatpush.msra.mxu0 %v148
    %229 = vmatpush.msra.mxu0 %v147
    %230 = vmatpush.msra.mxu0 %v146
    %231 = vmatpush.msra.mxu0 %v145
    %232 = vmatpush.msra.mxu0 %v144
    %233 = vmatpush.msra.mxu0 %v143
    %234 = vmatpush.msra.mxu0 %v142
    %235 = vmatpush.msra.mxu0 %v141
    %236 = vmatpush.msra.mxu0 %v140
    %237 = vmatpush.msra.mxu0 %v139
    %238 = vmatpush.msra.mxu0 %v138
    %239 = vmatmul.f32.gmra.mxu0 %v91
    %v240 = vpop.f32.mrf.mxu0
    %v241 = vadd.f32 %v176, %v240
    %242 = vmatmul.f32.gmra.mxu0 %v93
    %v243 = vpop.f32.mrf.mxu0
    %v244 = vadd.f32 %v179, %v243
    %245 = vmatmul.f32.gmra.mxu0 %v95
    %v246 = vpop.f32.mrf.mxu0
    %v247 = vadd.f32 %v182, %v246
    %248 = vmatmul.f32.gmra.mxu0 %v97
    %v249 = vpop.f32.mrf.mxu0
    %v250 = vadd.f32 %v185, %v249
    %251 = vmatmul.f32.gmra.mxu0 %v99
    %v252 = vpop.f32.mrf.mxu0
    %v253 = vadd.f32 %v188, %v252
    %254 = vmatmul.f32.gmra.mxu0 %v101
    %v255 = vpop.f32.mrf.mxu0
    %v256 = vadd.f32 %v191, %v255
    %257 = vmatmul.f32.gmra.mxu0 %v103
    %v258 = vpop.f32.mrf.mxu0
    %v259 = vadd.f32 %v194, %v258
    %260 = vmatmul.f32.gmra.mxu0 %v105
    %v261 = vpop.f32.mrf.mxu0
    %v262 = vadd.f32 %v197, %v261
    %263 = vmatmul.f32.gmra.mxu0 %v107
    %v264 = vpop.f32.mrf.mxu0
    %v265 = vadd.f32 %v200, %v264
    %266 = vmatmul.f32.gmra.mxu0 %v109
    %v267 = vpop.f32.mrf.mxu0
    %v268 = vadd.f32 %v203, %v267
    %269 = vmatmul.f32.gmra.mxu0 %v111
    %v270 = vpop.f32.mrf.mxu0
    %v271 = vadd.f32 %v206, %v270
    %272 = vmatmul.f32.gmra.mxu0 %v113
    %v273 = vpop.f32.mrf.mxu0
    %v274 = vadd.f32 %v209, %v273
    %275 = vmatmul.f32.gmra.mxu0 %v115
    %v276 = vpop.f32.mrf.mxu0
    %v277 = vadd.f32 %v212, %v276
    %278 = vmatmul.f32.gmra.mxu0 %v117
    %v279 = vpop.f32.mrf.mxu0
    %v280 = vadd.f32 %v215, %v279
    %281 = vmatmul.f32.gmra.mxu0 %v119
    %v282 = vpop.f32.mrf.mxu0
    %v283 = vadd.f32 %v218, %v282
    %284 = vmatmul.f32.gmra.mxu0 %v121
    %v285 = vpop.f32.mrf.mxu0
    %v286 = vadd.f32 %v221, %v285
    %287 = vdwg.mxu0
    %v288 = vmax.f32 %v241, 0.0
    %v289 = vmax.f32 %v244, 0.0
    %v290 = vmax.f32 %v247, 0.0
    %v291 = vmax.f32 %v250, 0.0
    %v292 = vmax.f32 %v253, 0.0
    %v293 = vmax.f32 %v256, 0.0
    %v294 = vmax.f32 %v259, 0.0
    %v295 = vmax.f32 %v262, 0.0
    %v296 = vmax.f32 %v265, 0.0
    %v297 = vmax.f32 %v268, 0.0
    %v298 = vmax.f32 %v271, 0.0
    %v299 = vmax.f32 %v274, 0.0
    %v300 = vmax.f32 %v277, 0.0
    %v301 = vmax.f32 %v280, 0.0
    %v302 = vmax.f32 %v283, 0.0
    %v303 = vmax.f32 %v286, 0.0
    %v304 = vld [vmem:[#allocation7] sm:$0xff]
    %v305 = vld [vmem:[#allocation7 + $0x8] sm:$0xff]
    %v306 = vld [vmem:[#allocation7 + $0x10] sm:$0xff]
    %v307 = vld [vmem:[#allocation7 + $0x18] sm:$0xff]
    %v308 = vld [vmem:[#allocation7 + $0x20] sm:$0xff]
    %v309 = vld [vmem:[#allocation7 + $0x28] sm:$0xff]
    %v310 = vld [vmem:[#allocation7 + $0x30] sm:$0xff]
    %v311 = vld [vmem:[#allocation7 + $0x38] sm:$0xff]
    %v312 = vld [vmem:[#allocation7 + $0x40] sm:$0xff]
    %v313 = vld [vmem:[#allocation7 + $0x48] sm:$0xff]
    %v314 = vld [vmem:[#allocation7 + $0x50] sm:$0xff]
    %v315 = vld [vmem:[#allocation7 + $0x58] sm:$0xff]
    %v316 = vld [vmem:[#allocation7 + $0x60] sm:$0xff]
    %v317 = vld [vmem:[#allocation7 + $0x68] sm:$0xff]
    %v318 = vld [vmem:[#allocation7 + $0x70] sm:$0xff]
    %v319 = vld [vmem:[#allocation7 + $0x78] sm:$0xff]
    %v320 = vld [vmem:[%s4] sm:$0x1]
    %v322 = vperm.slane %v320, 0
    %324 = vmatpush.msra.mxu0 %v319
    %325 = vmatpush.msra.mxu0 %v318
    %326 = vmatpush.msra.mxu0 %v317
    %327 = vmatpush.msra.mxu0 %v316
    %328 = vmatpush.msra.mxu0 %v315
    %329 = vmatpush.msra.mxu0 %v314
    %330 = vmatpush.msra.mxu0 %v313
    %331 = vmatpush.msra.mxu0 %v312
    %332 = vmatpush.msra.mxu0 %v311
    %333 = vmatpush.msra.mxu0 %v310
    %334 = vmatpush.msra.mxu0 %v309
    %335 = vmatpush.msra.mxu0 %v308
    %336 = vmatpush.msra.mxu0 %v307
    %337 = vmatpush.msra.mxu0 %v306
    %338 = vmatpush.msra.mxu0 %v305
    %339 = vmatpush.msra.mxu0 %v304
    %340 = vmatmul.f32.gmra.mxu0 %v288
    %v341 = vpop.f32.mrf.mxu0
    %v342 = vadd.f32 %v322, %v341
    %343 = vmatmul.f32.gmra.mxu0 %v289
    %v344 = vpop.f32.mrf.mxu0
    %v345 = vadd.f32 %v322, %v344
    %346 = vmatmul.f32.gmra.mxu0 %v290
    %v347 = vpop.f32.mrf.mxu0
    %v348 = vadd.f32 %v322, %v347
    %349 = vmatmul.f32.gmra.mxu0 %v291
    %v350 = vpop.f32.mrf.mxu0
    %v351 = vadd.f32 %v322, %v350
    %352 = vmatmul.f32.gmra.mxu0 %v292
    %v353 = vpop.f32.mrf.mxu0
    %v354 = vadd.f32 %v322, %v353
    %355 = vmatmul.f32.gmra.mxu0 %v293
    %v356 = vpop.f32.mrf.mxu0
    %v357 = vadd.f32 %v322, %v356
    %358 = vmatmul.f32.gmra.mxu0 %v294
    %v359 = vpop.f32.mrf.mxu0
    %v360 = vadd.f32 %v322, %v359
    %361 = vmatmul.f32.gmra.mxu0 %v295
    %v362 = vpop.f32.mrf.mxu0
    %v363 = vadd.f32 %v322, %v362
    %364 = vmatmul.f32.gmra.mxu0 %v296
    %v365 = vpop.f32.mrf.mxu0
    %v366 = vadd.f32 %v322, %v365
    %367 = vmatmul.f32.gmra.mxu0 %v297
    %v368 = vpop.f32.mrf.mxu0
    %v369 = vadd.f32 %v322, %v368
    %370 = vmatmul.f32.gmra.mxu0 %v298
    %v371 = vpop.f32.mrf.mxu0
    %v372 = vadd.f32 %v322, %v371
    %373 = vmatmul.f32.gmra.mxu0 %v299
    %v374 = vpop.f32.mrf.mxu0
    %v375 = vadd.f32 %v322, %v374
    %376 = vmatmul.f32.gmra.mxu0 %v300
    %v377 = vpop.f32.mrf.mxu0
    %v378 = vadd.f32 %v322, %v377
    %379 = vmatmul.f32.gmra.mxu0 %v301
    %v380 = vpop.f32.mrf.mxu0
    %v381 = vadd.f32 %v322, %v380
    %382 = vmatmul.f32.gmra.mxu0 %v302
    %v383 = vpop.f32.mrf.mxu0
    %v384 = vadd.f32 %v322, %v383
    %385 = vmatmul.f32.gmra.mxu0 %v303
    %v386 = vpop.f32.mrf.mxu0
    %v387 = vadd.f32 %v322, %v386
    %388 = vdwg.mxu0
    %v389 = vmax.f32 %v342, 0.0
    %v390 = vmax.f32 %v345, 0.0
    %v391 = vmax.f32 %v348, 0.0
    %v392 = vmax.f32 %v351, 0.0
    %v393 = vmax.f32 %v354, 0.0
    %v394 = vmax.f32 %v357, 0.0
    %v395 = vmax.f32 %v360, 0.0
    %v396 = vmax.f32 %v363, 0.0
    %v397 = vmax.f32 %v366, 0.0
    %v398 = vmax.f32 %v369, 0.0
    %v399 = vmax.f32 %v372, 0.0
    %v400 = vmax.f32 %v375, 0.0
    %v401 = vmax.f32 %v378, 0.0
    %v402 = vmax.f32 %v381, 0.0
    %v403 = vmax.f32 %v384, 0.0
    %v404 = vmax.f32 %v387, 0.0
    %v405 = vld [vmem:[#allocation8] sm:$0xff]
    %v406 = vld [vmem:[#allocation8 + $0x8] sm:$0xff]
    %v407 = vld [vmem:[#allocation8 + $0x10] sm:$0xff]
    %v408 = vld [vmem:[#allocation8 + $0x18] sm:$0xff]
    %v409 = vld [vmem:[#allocation8 + $0x20] sm:$0xff]
    %v410 = vld [vmem:[#allocation8 + $0x28] sm:$0xff]
    %v411 = vld [vmem:[#allocation8 + $0x30] sm:$0xff]
    %v412 = vld [vmem:[#allocation8 + $0x38] sm:$0xff]
    %v413 = vld [vmem:[#allocation8 + $0x40] sm:$0xff]
    %v414 = vld [vmem:[#allocation8 + $0x48] sm:$0xff]
    %v415 = vld [vmem:[#allocation8 + $0x50] sm:$0xff]
    %v416 = vld [vmem:[#allocation8 + $0x58] sm:$0xff]
    %v417 = vld [vmem:[#allocation8 + $0x60] sm:$0xff]
    %v418 = vld [vmem:[#allocation8 + $0x68] sm:$0xff]
    %v419 = vld [vmem:[#allocation8 + $0x70] sm:$0xff]
    %v420 = vld [vmem:[#allocation8 + $0x78] sm:$0xff]
    %v421 = vld [vmem:[%s6] sm:$0x1]
    %v423 = vperm.slane %v421, 0
    %425 = vmatpush.msra.mxu0 %v420
    %426 = vmatpush.msra.mxu0 %v419
    %427 = vmatpush.msra.mxu0 %v418
    %428 = vmatpush.msra.mxu0 %v417
    %429 = vmatpush.msra.mxu0 %v416
    %430 = vmatpush.msra.mxu0 %v415
    %431 = vmatpush.msra.mxu0 %v414
    %432 = vmatpush.msra.mxu0 %v413
    %433 = vmatpush.msra.mxu0 %v412
    %434 = vmatpush.msra.mxu0 %v411
    %435 = vmatpush.msra.mxu0 %v410
    %436 = vmatpush.msra.mxu0 %v409
    %437 = vmatpush.msra.mxu0 %v408
    %438 = vmatpush.msra.mxu0 %v407
    %439 = vmatpush.msra.mxu0 %v406
    %440 = vmatpush.msra.mxu0 %v405
    %441 = vmatmul.f32.gmra.mxu0 %v389
    %v442 = vpop.f32.mrf.mxu0
    %v443 = vadd.f32 %v423, %v442
    %444 = vmatmul.f32.gmra.mxu0 %v390
    %v445 = vpop.f32.mrf.mxu0
    %v446 = vadd.f32 %v423, %v445
    %447 = vmatmul.f32.gmra.mxu0 %v391
    %v448 = vpop.f32.mrf.mxu0
    %v449 = vadd.f32 %v423, %v448
    %450 = vmatmul.f32.gmra.mxu0 %v392
    %v451 = vpop.f32.mrf.mxu0
    %v452 = vadd.f32 %v423, %v451
    %453 = vmatmul.f32.gmra.mxu0 %v393
    %v454 = vpop.f32.mrf.mxu0
    %v455 = vadd.f32 %v423, %v454
    %456 = vmatmul.f32.gmra.mxu0 %v394
    %v457 = vpop.f32.mrf.mxu0
    %v458 = vadd.f32 %v423, %v457
    %459 = vmatmul.f32.gmra.mxu0 %v395
    %v460 = vpop.f32.mrf.mxu0
    %v461 = vadd.f32 %v423, %v460
    %462 = vmatmul.f32.gmra.mxu0 %v396
    %v463 = vpop.f32.mrf.mxu0
    %v464 = vadd.f32 %v423, %v463
    %465 = vmatmul.f32.gmra.mxu0 %v397
    %v466 = vpop.f32.mrf.mxu0
    %v467 = vadd.f32 %v423, %v466
    %468 = vmatmul.f32.gmra.mxu0 %v398
    %v469 = vpop.f32.mrf.mxu0
    %v470 = vadd.f32 %v423, %v469
    %471 = vmatmul.f32.gmra.mxu0 %v399
    %v472 = vpop.f32.mrf.mxu0
    %v473 = vadd.f32 %v423, %v472
    %474 = vmatmul.f32.gmra.mxu0 %v400
    %v475 = vpop.f32.mrf.mxu0
    %v476 = vadd.f32 %v423, %v475
    %477 = vmatmul.f32.gmra.mxu0 %v401
    %v478 = vpop.f32.mrf.mxu0
    %v479 = vadd.f32 %v423, %v478
    %480 = vmatmul.f32.gmra.mxu0 %v402
    %v481 = vpop.f32.mrf.mxu0
    %v482 = vadd.f32 %v423, %v481
    %483 = vmatmul.f32.gmra.mxu0 %v403
    %v484 = vpop.f32.mrf.mxu0
    %v485 = vadd.f32 %v423, %v484
    %486 = vmatmul.f32.gmra.mxu0 %v404
    %v487 = vpop.f32.mrf.mxu0
    %v488 = vadd.f32 %v423, %v487
    %489 = vdwg.mxu0
    %490 = vst [vmem:[#allocation10] sm:$0xff] %v443
    %491 = vst [vmem:[#allocation10 + $0x8] sm:$0xff] %v446
    %492 = vst [vmem:[#allocation10 + $0x10] sm:$0xff] %v449
    %493 = vst [vmem:[#allocation10 + $0x18] sm:$0xff] %v452
    %494 = vst [vmem:[#allocation10 + $0x20] sm:$0xff] %v455
    %495 = vst [vmem:[#allocation10 + $0x28] sm:$0xff] %v458
    %496 = vst [vmem:[#allocation10 + $0x30] sm:$0xff] %v461
    %497 = vst [vmem:[#allocation10 + $0x38] sm:$0xff] %v464
    %498 = vst [vmem:[#allocation10 + $0x40] sm:$0xff] %v467
    %499 = vst [vmem:[#allocation10 + $0x48] sm:$0xff] %v470
    %500 = vst [vmem:[#allocation10 + $0x50] sm:$0xff] %v473
    %501 = vst [vmem:[#allocation10 + $0x58] sm:$0xff] %v476
    %502 = vst [vmem:[#allocation10 + $0x60] sm:$0xff] %v479
    %503 = vst [vmem:[#allocation10 + $0x68] sm:$0xff] %v482
    %504 = vst [vmem:[#allocation10 + $0x70] sm:$0xff] %v485
    %505 = vst [vmem:[#allocation10 + $0x78] sm:$0xff] %v488
    // Predicated region
    $region46: #{tpu_custom_call.1} parent=1 // pred_check
      _
    $region47: #{tpu_custom_call.1} parent=1 // pred_check_branch
      %507 = sbr.rel (0) target = $region49
    $region48: #{tpu_custom_call.1} parent=1 // pred_region
      %509 = vsyncadd [#allocation4], 0
      %s510 = sshll.u32 [#allocation10], 4
      %s511 = int_to_ptr.vmem [resolvable:$true] %s510
      %s512 = sshll.u32 %s7, 4
      %s513 = int_to_ptr.hbm [resolvable:$true] %s512
      %518 = dma.vmem_to_hbm [thread:$0]  %s511, 2048, %s513, [#allocation4], 128, 128, 8
    $region49: #{tpu_custom_call.1} parent=1 // pred_fallthru
      _
    // Predicated region
    $region50: #{tpu_custom_call.1} parent=1 // pred_check
      _
    $region51: #{tpu_custom_call.1} parent=1 // pred_check_branch
      %520 = sbr.rel (0) target = $region53
    $region52: #{tpu_custom_call.1} parent=1 // pred_region
      %522 = dma.done [#allocation4], 2048
    $region53: #{tpu_custom_call.1} parent=1 // pred_fallthru
      _
    %523 = vsyncpa [#allocation3], 1
    %524 = vsyncpa [#allocation6], 1
    %525 = vsyncpa [#allocation9], 1
    %526 = vsyncpa [#allocation4], 1

</llo_original>
